<compile_context>
chip_gen: v6e
topology: v6e:2x2x1
jax: 0.10.0
libtpu: 0.0.40
codegen_flags: <defaults>
</compile_context>

<pallas_src>
import math
import functools

import jax
import jax.numpy as jnp
from jax import lax
from jax.experimental import pallas as pl
from jax.experimental.pallas import tpu as pltpu

# ----------------------------- config (small) -----------------------------
B, T, C, H = 2, 8, 32, 4            # batch, seq, n_embd, n_head
HD = C // H                         # head dim
EPS = 1e-5                          # torch LayerNorm default
NEG_INF = -1e30

# rows of the packed f32 vector slab
_LN1W, _LN1B, _LN2W, _LN2B, _BPROJ, _BP2 = range(6)


def _layernorm(h, w, b):
    mu = jnp.mean(h, axis=-1, keepdims=True)
    var = jnp.mean((h - mu) ** 2, axis=-1, keepdims=True)
    return (h - mu) * lax.rsqrt(var + EPS) * w + b


def _gelu_tanh(x):
    # GELU(approximate='tanh')
    c = math.sqrt(2.0 / math.pi)
    return 0.5 * x * (1.0 + jnp.tanh(c * (x + 0.044715 * x * x * x)))


# ------------------------------- kernel -----------------------------------
def block_kernel(x_ref,        # (M, C)           f32
                 vec_ref,      # (6, C)            f32  ln1w/ln1b/ln2w/ln2b/bproj/bp2
                 wqkv_ref,     # (3, H, C, HD)     bf16
                 bqkv_ref,     # (3, H, 1, HD)     f32
                 wproj_ref,    # (H, HD, C)        bf16
                 wfc_ref,      # (C, 4C)           bf16
                 bfc_ref,      # (1, 4C)           f32
                 wp2_ref,      # (4C, C)           bf16
                 o_ref,        # (M, C)
                 *, seq_len, n_head, head_dim):
    x = x_ref[...].astype(jnp.float32)                         # (M, C), M = B*T
    m = x.shape[0]

    # ---- ln_1 ----
    h = _layernorm(x, vec_ref[_LN1W], vec_ref[_LN1B])          # f32 elementwise
    h_lo = h.astype(jnp.bfloat16)                              # bf16 MXU operand

    # ---- causal mask, block-diagonal over the folded batch dim; built once ----
    row = lax.broadcasted_iota(jnp.int32, (m, m), 0)
    col = lax.broadcasted_iota(jnp.int32, (m, m), 1)
    if seq_len & (seq_len - 1) == 0:
        shift = seq_len.bit_length() - 1                       # power of two: shift, not div
        same_batch = (row >> shift) == (col >> shift)
    else:
        same_batch = (row // seq_len) == (col // seq_len)
    mask = same_batch & (col <= row)

    scale = 1.0 / math.sqrt(head_dim)
    dn = (((1,), (1,)), ((), ()))                              # contract dim1 of both == q @ k.T

    # residual-1 accumulator, seeded with the c_proj bias (folds bias add for free)
    x1 = x + vec_ref[_BPROJ]

    for hh in range(n_head):                                   # static, small
        # leading-axis weight/bias indexing: no lane-offset slicing
        q_h = jnp.dot(h_lo, wqkv_ref[0, hh],
                      preferred_element_type=jnp.float32) + bqkv_ref[0, hh]   # (M, HD)
        k_h = jnp.dot(h_lo, wqkv_ref[1, hh],
                      preferred_element_type=jnp.float32) + bqkv_ref[1, hh]
        v_h = jnp.dot(h_lo, wqkv_ref[2, hh],
                      preferred_element_type=jnp.float32) + bqkv_ref[2, hh]

        q_h = (q_h * scale).astype(jnp.bfloat16)
        k_h = k_h.astype(jnp.bfloat16)

        s = lax.dot_general(q_h, k_h, dn,
                            preferred_element_type=jnp.float32)               # (M, M)
        s = jnp.where(mask, s, NEG_INF)
        s = s - jnp.max(s, axis=-1, keepdims=True)
        p = jnp.exp(s)
        p = p * pl.reciprocal(jnp.sum(p, axis=-1, keepdims=True), approx=True)

        y_h = jnp.dot(p.astype(jnp.bfloat16), v_h.astype(jnp.bfloat16),
                      preferred_element_type=jnp.float32)                      # (M, HD)
        # accumulate the c_proj contribution of this head straight into the residual
        x1 = x1 + jnp.dot(y_h.astype(jnp.bfloat16), wproj_ref[hh],
                          preferred_element_type=jnp.float32)                  # (M, C)

    # ---- ln_2 + MLP ----
    h2 = _layernorm(x1, vec_ref[_LN2W], vec_ref[_LN2B]).astype(jnp.bfloat16)
    ff = jnp.dot(h2, wfc_ref[...], preferred_element_type=jnp.float32) + bfc_ref[0]
    ff = _gelu_tanh(ff).astype(jnp.bfloat16)
    ff = jnp.dot(ff, wp2_ref[...], preferred_element_type=jnp.float32) + vec_ref[_BP2]

    o_ref[...] = (x1 + ff).astype(o_ref.dtype)                 # residual 2


# ----------------------- one-time parameter preparation ---------------------
def prepare_block_params(params, n_head):
    """All casting / splitting / reshaping done once, off the hot path."""
    (ln1w, ln1b, wattn, battn, wproj, bproj,
     ln2w, ln2b, wfc, bfc, wp2, bp2) = params
    c = wattn.shape[0]
    hd = c // n_head
    bf16 = lambda w: w.astype(jnp.bfloat16)

    vec = jnp.concatenate([
        ln1w.reshape(1, c), ln1b.reshape(1, c),
        ln2w.reshape(1, c), ln2b.reshape(1, c),
        bproj.reshape(1, c), bp2.reshape(1, c)], axis=0).astype(jnp.float32)   # (6, C)

    # c_attn (C, 3C) -> (3, H, C, HD): q/k/v split + per-head, leading-axis indexable
    wqkv = bf16(jnp.transpose(wattn.reshape(c, 3, n_head, hd), (1, 2, 0, 3)))  # (3,H,C,HD)
    bqkv = battn.reshape(3, n_head, 1, hd).astype(jnp.float32)                 # (3,H,1,HD)

    wproj_h = bf16(wproj.reshape(n_head, hd, c))                               # (H,HD,C)

    return dict(
        vec=vec, wqkv=wqkv, bqkv=bqkv, wproj=wproj_h,
        wfc=bf16(wfc), bfc=bfc.reshape(1, -1).astype(jnp.float32), wp2=bf16(wp2),
    )


# ------------------------------- wrapper -----------------------------------
def gpt_block(x, prepared, n_head):
    Bx, Tx, Cx = x.shape
    Mx = Bx * Tx

    inputs = (
        x.reshape(Mx, Cx),                 # fold B*T into one M row dimension
        prepared["vec"],
        prepared["wqkv"], prepared["bqkv"], prepared["wproj"],
        prepared["wfc"], prepared["bfc"], prepared["wp2"],
    )

    # grid=() -> single invocation; every array is one full-shape VMEM block.
    def full(a):
        return pl.BlockSpec(a.shape, lambda *_: (0,) * a.ndim)

    kernel = functools.partial(block_kernel, seq_len=Tx,
                               n_head=n_head, head_dim=Cx // n_head)

    out = pl.pallas_call(
        kernel,
        out_shape=jax.ShapeDtypeStruct((Mx, Cx), x.dtype),
        in_specs=[full(a) for a in inputs],
        out_specs=pl.BlockSpec((Mx, Cx), lambda *_: (0, 0)),
    )(*inputs)
    return out.reshape(Bx, Tx, Cx)


# ----------------------- pure-JAX reference (for check) --------------------
def gpt_block_ref(x, params):
    (ln1w, ln1b, wattn, battn, wproj, bproj,
     ln2w, ln2b, wfc, bfc, wp2, bp2) = params
    ln1w, ln1b, battn, bproj, ln2w, ln2b, bfc, bp2 = (
        a[0] for a in (ln1w, ln1b, battn, bproj, ln2w, ln2b, bfc, bp2))

    def ln(h, w, b):
        mu = h.mean(-1, keepdims=True)
        var = ((h - mu) ** 2).mean(-1, keepdims=True)
        return (h - mu) / jnp.sqrt(var + EPS) * w + b

    h = ln(x, ln1w, ln1b)
    qkv = h @ wattn + battn
    q, k, v = jnp.split(qkv, 3, axis=-1)
    q = q.reshape(B, T, H, HD).transpose(0, 2, 1, 3)
    k = k.reshape(B, T, H, HD).transpose(0, 2, 1, 3)
    v = v.reshape(B, T, H, HD).transpose(0, 2, 1, 3)
    s = jnp.einsum("bhqd,bhkd->bhqk", q, k) / math.sqrt(HD)
    mask = jnp.tril(jnp.ones((T, T), bool))
    s = jnp.where(mask, s, -jnp.inf)
    p = jax.nn.softmax(s, axis=-1)
    y = jnp.einsum("bhqk,bhkd->bhqd", p, v)
    y = y.transpose(0, 2, 1, 3).reshape(B, T, C)
    x1 = x + (y @ wproj + bproj)

    h2 = ln(x1, ln2w, ln2b)
    ff = jax.nn.gelu(h2 @ wfc + bfc, approximate=True)
    return x1 + (ff @ wp2 + bp2)


# --------------------------------- main -------------------------------------
if __name__ == "__main__":
    key = jax.random.PRNGKey(0)
    keys = jax.random.split(key, 16)

    def rnd(k, shape, scale=0.02):
        return (scale * jax.random.normal(k, shape)).astype(jnp.float32)

    params = (
        jnp.ones((1, C), jnp.float32),            # ln_1.weight
        jnp.zeros((1, C), jnp.float32),           # ln_1.bias
        rnd(keys[0], (C, 3 * C)),                 # c_attn.weight (in, out)
        rnd(keys[1], (1, 3 * C)),                 # c_attn.bias
        rnd(keys[2], (C, C)),                     # attn.c_proj.weight
        rnd(keys[3], (1, C)),                     # attn.c_proj.bias
        jnp.ones((1, C), jnp.float32),            # ln_2.weight
        jnp.zeros((1, C), jnp.float32),           # ln_2.bias
        rnd(keys[4], (C, 4 * C)),                 # c_fc.weight
        rnd(keys[5], (1, 4 * C)),                 # c_fc.bias
        rnd(keys[6], (4 * C, C)),                 # mlp.c_proj.weight
        rnd(keys[7], (1, C)),                     # mlp.c_proj.bias
    )

    x = jax.random.normal(keys[8], (B, T, C), dtype=jnp.float32)

    # One-time weight preparation (off the hot path).
    prepared = jax.tree_util.tree_map(jax.block_until_ready,
                                      prepare_block_params(params, n_head=H))

    out = jax.block_until_ready(gpt_block(x, prepared, n_head=H))
    ref = gpt_block_ref(x, params)

    assert out.shape == (B, T, C)
    max_err = float(jnp.max(jnp.abs(out - ref)))
    # bf16 MXU operands + approx reciprocal -> compare against the f32 reference at 1e-2
    assert jnp.allclose(out, ref, atol=1e-2, rtol=1e-2), max_err

    print("KERNEL_OK")
</pallas_src>

<mosaic_0001>
module attributes {stable_mosaic.version = 11 : i64} {
  func.func @block_kernel(%arg0: memref<16x32xf32, #tpu.memory_space<vmem>>, %arg1: memref<6x32xf32, #tpu.memory_space<vmem>>, %arg2: memref<3x4x32x8xbf16, #tpu.memory_space<vmem>>, %arg3: memref<3x4x1x8xf32, #tpu.memory_space<vmem>>, %arg4: memref<4x8x32xbf16, #tpu.memory_space<vmem>>, %arg5: memref<32x128xbf16, #tpu.memory_space<vmem>>, %arg6: memref<1x128xf32, #tpu.memory_space<vmem>>, %arg7: memref<128x32xbf16, #tpu.memory_space<vmem>>, %arg8: memref<16x32xf32, #tpu.memory_space<vmem>>) attributes {dimension_semantics = [], scalar_prefetch = 0 : i64, scratch_operands = 0 : i64, tpu.core_type = #tpu.core_type<tc>} {
    %c0 = arith.constant 0 : index
    %c0_0 = arith.constant 0 : index
    %0 = vector.load %arg0[%c0, %c0_0] : memref<16x32xf32, #tpu.memory_space<vmem>>, vector<16x32xf32>
    %c0_1 = arith.constant 0 : index
    %c0_2 = arith.constant 0 : index
    %1 = vector.load %arg1[%c0_1, %c0_2] : memref<6x32xf32, #tpu.memory_space<vmem>>, vector<1x32xf32>
    %2 = vector.shape_cast %1 : vector<1x32xf32> to vector<32xf32>
    %c1 = arith.constant 1 : index
    %c0_3 = arith.constant 0 : index
    %3 = vector.load %arg1[%c1, %c0_3] : memref<6x32xf32, #tpu.memory_space<vmem>>, vector<1x32xf32>
    %4 = vector.shape_cast %3 : vector<1x32xf32> to vector<32xf32>
    %cst = arith.constant dense<0.000000e+00> : vector<16xf32>
    %5 = vector.multi_reduction <add>, %0, %cst [1] : vector<16x32xf32> to vector<16xf32>
    %6 = vector.shape_cast %5 : vector<16xf32> to vector<16x1xf32>
    %cst_4 = arith.constant 3.200000e+01 : f32
    %7 = vector.broadcast %cst_4 : f32 to vector<16x1xf32>
    %8 = arith.divf %6, %7 : vector<16x1xf32>
    %9 = vector.broadcast %8 : vector<16x1xf32> to vector<16x32xf32>
    %10 = arith.subf %0, %9 : vector<16x32xf32>
    %11 = arith.mulf %10, %10 : vector<16x32xf32>
    %cst_5 = arith.constant dense<0.000000e+00> : vector<16xf32>
    %12 = vector.multi_reduction <add>, %11, %cst_5 [1] : vector<16x32xf32> to vector<16xf32>
    %13 = vector.shape_cast %12 : vector<16xf32> to vector<16x1xf32>
    %cst_6 = arith.constant 3.200000e+01 : f32
    %14 = vector.broadcast %cst_6 : f32 to vector<16x1xf32>
    %15 = arith.divf %13, %14 : vector<16x1xf32>
    %16 = vector.broadcast %8 : vector<16x1xf32> to vector<16x32xf32>
    %17 = arith.subf %0, %16 : vector<16x32xf32>
    %cst_7 = arith.constant 9.99999974E-6 : f32
    %18 = vector.broadcast %cst_7 : f32 to vector<16x1xf32>
    %19 = arith.addf %15, %18 : vector<16x1xf32>
    %20 = math.rsqrt %19 : vector<16x1xf32>
    %21 = vector.broadcast %20 : vector<16x1xf32> to vector<16x32xf32>
    %22 = arith.mulf %17, %21 : vector<16x32xf32>
    %23 = vector.shape_cast %2 : vector<32xf32> to vector<1x32xf32>
    %24 = vector.broadcast %23 : vector<1x32xf32> to vector<16x32xf32>
    %25 = arith.mulf %22, %24 : vector<16x32xf32>
    %26 = vector.shape_cast %4 : vector<32xf32> to vector<1x32xf32>
    %27 = vector.broadcast %26 : vector<1x32xf32> to vector<16x32xf32>
    %28 = arith.addf %25, %27 : vector<16x32xf32>
    %29 = arith.truncf %28 : vector<16x32xf32> to vector<16x32xbf16>
    %30 = tpu.iota {dimensions = array<i32: 0>} : vector<16x16xi32>
    %31 = tpu.iota {dimensions = array<i32: 1>} : vector<16x16xi32>
    %c3_i32 = arith.constant 3 : i32
    %32 = vector.broadcast %c3_i32 : i32 to vector<16x16xi32>
    %33 = arith.shrsi %30, %32 : vector<16x16xi32>
    %c3_i32_8 = arith.constant 3 : i32
    %34 = vector.broadcast %c3_i32_8 : i32 to vector<16x16xi32>
    %35 = arith.shrsi %31, %34 : vector<16x16xi32>
    %36 = arith.cmpi eq, %33, %35 : vector<16x16xi32>
    %37 = arith.cmpi sle, %31, %30 : vector<16x16xi32>
    %38 = arith.andi %36, %37 : vector<16x16xi1>
    %c4 = arith.constant 4 : index
    %c0_9 = arith.constant 0 : index
    %39 = vector.load %arg1[%c4, %c0_9] : memref<6x32xf32, #tpu.memory_space<vmem>>, vector<1x32xf32>
    %40 = vector.shape_cast %39 : vector<1x32xf32> to vector<32xf32>
    %41 = vector.shape_cast %40 : vector<32xf32> to vector<1x32xf32>
    %42 = vector.broadcast %41 : vector<1x32xf32> to vector<16x32xf32>
    %43 = arith.addf %0, %42 : vector<16x32xf32>
    %c0_10 = arith.constant 0 : index
    %c0_11 = arith.constant 0 : index
    %c0_12 = arith.constant 0 : index
    %c0_13 = arith.constant 0 : index
    %44 = vector.load %arg2[%c0_10, %c0_11, %c0_12, %c0_13] : memref<3x4x32x8xbf16, #tpu.memory_space<vmem>>, vector<1x1x32x8xbf16>
    %45 = vector.shape_cast %44 : vector<1x1x32x8xbf16> to vector<32x8xbf16>
    %cst_14 = arith.constant dense<0.000000e+00> : vector<16x8xf32>
    %46 = tpu.matmul %29, %45, %cst_14 {dimension_numbers = #tpu.dot_dimension_numbers<[1], [0], [0], [1], [0, 0, 1, 1], [], []>} : vector<16x32xbf16>, vector<32x8xbf16>, vector<16x8xf32> -> vector<16x8xf32>
    %c0_15 = arith.constant 0 : index
    %c0_16 = arith.constant 0 : index
    %c0_17 = arith.constant 0 : index
    %c0_18 = arith.constant 0 : index
    %47 = vector.load %arg3[%c0_15, %c0_16, %c0_17, %c0_18] : memref<3x4x1x8xf32, #tpu.memory_space<vmem>>, vector<1x1x1x8xf32>
    %48 = vector.shape_cast %47 : vector<1x1x1x8xf32> to vector<1x8xf32>
    %49 = vector.broadcast %48 : vector<1x8xf32> to vector<16x8xf32>
    %50 = arith.addf %46, %49 : vector<16x8xf32>
    %c1_19 = arith.constant 1 : index
    %c0_20 = arith.constant 0 : index
    %c0_21 = arith.constant 0 : index
    %c0_22 = arith.constant 0 : index
    %51 = vector.load %arg2[%c1_19, %c0_20, %c0_21, %c0_22] : memref<3x4x32x8xbf16, #tpu.memory_space<vmem>>, vector<1x1x32x8xbf16>
    %52 = vector.shape_cast %51 : vector<1x1x32x8xbf16> to vector<32x8xbf16>
    %cst_23 = arith.constant dense<0.000000e+00> : vector<16x8xf32>
    %53 = tpu.matmul %29, %52, %cst_23 {dimension_numbers = #tpu.dot_dimension_numbers<[1], [0], [0], [1], [0, 0, 1, 1], [], []>} : vector<16x32xbf16>, vector<32x8xbf16>, vector<16x8xf32> -> vector<16x8xf32>
    %c1_24 = arith.constant 1 : index
    %c0_25 = arith.constant 0 : index
    %c0_26 = arith.constant 0 : index
    %c0_27 = arith.constant 0 : index
    %54 = vector.load %arg3[%c1_24, %c0_25, %c0_26, %c0_27] : memref<3x4x1x8xf32, #tpu.memory_space<vmem>>, vector<1x1x1x8xf32>
    %55 = vector.shape_cast %54 : vector<1x1x1x8xf32> to vector<1x8xf32>
    %56 = vector.broadcast %55 : vector<1x8xf32> to vector<16x8xf32>
    %57 = arith.addf %53, %56 : vector<16x8xf32>
    %c2 = arith.constant 2 : index
    %c0_28 = arith.constant 0 : index
    %c0_29 = arith.constant 0 : index
    %c0_30 = arith.constant 0 : index
    %58 = vector.load %arg2[%c2, %c0_28, %c0_29, %c0_30] : memref<3x4x32x8xbf16, #tpu.memory_space<vmem>>, vector<1x1x32x8xbf16>
    %59 = vector.shape_cast %58 : vector<1x1x32x8xbf16> to vector<32x8xbf16>
    %cst_31 = arith.constant dense<0.000000e+00> : vector<16x8xf32>
    %60 = tpu.matmul %29, %59, %cst_31 {dimension_numbers = #tpu.dot_dimension_numbers<[1], [0], [0], [1], [0, 0, 1, 1], [], []>} : vector<16x32xbf16>, vector<32x8xbf16>, vector<16x8xf32> -> vector<16x8xf32>
    %c2_32 = arith.constant 2 : index
    %c0_33 = arith.constant 0 : index
    %c0_34 = arith.constant 0 : index
    %c0_35 = arith.constant 0 : index
    %61 = vector.load %arg3[%c2_32, %c0_33, %c0_34, %c0_35] : memref<3x4x1x8xf32, #tpu.memory_space<vmem>>, vector<1x1x1x8xf32>
    %62 = vector.shape_cast %61 : vector<1x1x1x8xf32> to vector<1x8xf32>
    %63 = vector.broadcast %62 : vector<1x8xf32> to vector<16x8xf32>
    %64 = arith.addf %60, %63 : vector<16x8xf32>
    %cst_36 = arith.constant 0.353553385 : f32
    %65 = vector.broadcast %cst_36 : f32 to vector<16x8xf32>
    %66 = arith.mulf %50, %65 : vector<16x8xf32>
    %67 = arith.truncf %66 : vector<16x8xf32> to vector<16x8xbf16>
    %68 = arith.truncf %57 : vector<16x8xf32> to vector<16x8xbf16>
    %cst_37 = arith.constant dense<0.000000e+00> : vector<16x16xf32>
    %69 = tpu.matmul %67, %68, %cst_37 {dimension_numbers = #tpu.dot_dimension_numbers<[1], [1], [0], [0], [0, 0, 1, 0], [], []>} : vector<16x8xbf16>, vector<16x8xbf16>, vector<16x16xf32> -> vector<16x16xf32>
    %cst_38 = arith.constant -1.000000e+30 : f32
    %70 = vector.broadcast %cst_38 : f32 to vector<16x16xf32>
    %71 = arith.select %38, %69, %70 : vector<16x16xi1>, vector<16x16xf32>
    %cst_39 = arith.constant dense<0xFF800000> : vector<16xf32>
    %72 = vector.multi_reduction <maximumf>, %71, %cst_39 [1] : vector<16x16xf32> to vector<16xf32>
    %73 = vector.shape_cast %72 : vector<16xf32> to vector<16x1xf32>
    %74 = vector.broadcast %73 : vector<16x1xf32> to vector<16x16xf32>
    %75 = arith.subf %71, %74 : vector<16x16xf32>
    %76 = math.exp %75 : vector<16x16xf32>
    %cst_40 = arith.constant dense<0.000000e+00> : vector<16xf32>
    %77 = vector.multi_reduction <add>, %76, %cst_40 [1] : vector<16x16xf32> to vector<16xf32>
    %78 = vector.shape_cast %77 : vector<16xf32> to vector<16x1xf32>
    %79 = tpu.reciprocal %78 {approx = true} : vector<16x1xf32> -> vector<16x1xf32>
    %80 = vector.broadcast %79 : vector<16x1xf32> to vector<16x16xf32>
    %81 = arith.mulf %76, %80 : vector<16x16xf32>
    %82 = arith.truncf %81 : vector<16x16xf32> to vector<16x16xbf16>
    %83 = arith.truncf %64 : vector<16x8xf32> to vector<16x8xbf16>
    %cst_41 = arith.constant dense<0.000000e+00> : vector<16x8xf32>
    %84 = tpu.matmul %82, %83, %cst_41 {dimension_numbers = #tpu.dot_dimension_numbers<[1], [0], [0], [1], [0, 0, 1, 1], [], []>} : vector<16x16xbf16>, vector<16x8xbf16>, vector<16x8xf32> -> vector<16x8xf32>
    %85 = arith.truncf %84 : vector<16x8xf32> to vector<16x8xbf16>
    %c0_42 = arith.constant 0 : index
    %c0_43 = arith.constant 0 : index
    %c0_44 = arith.constant 0 : index
    %86 = vector.load %arg4[%c0_42, %c0_43, %c0_44] : memref<4x8x32xbf16, #tpu.memory_space<vmem>>, vector<1x8x32xbf16>
    %87 = vector.shape_cast %86 : vector<1x8x32xbf16> to vector<8x32xbf16>
    %cst_45 = arith.constant dense<0.000000e+00> : vector<16x32xf32>
    %88 = tpu.matmul %85, %87, %cst_45 {dimension_numbers = #tpu.dot_dimension_numbers<[1], [0], [0], [1], [0, 0, 1, 1], [], []>} : vector<16x8xbf16>, vector<8x32xbf16>, vector<16x32xf32> -> vector<16x32xf32>
    %89 = arith.addf %43, %88 : vector<16x32xf32>
    %c0_46 = arith.constant 0 : index
    %c1_47 = arith.constant 1 : index
    %c0_48 = arith.constant 0 : index
    %c0_49 = arith.constant 0 : index
    %90 = vector.load %arg2[%c0_46, %c1_47, %c0_48, %c0_49] : memref<3x4x32x8xbf16, #tpu.memory_space<vmem>>, vector<1x1x32x8xbf16>
    %91 = vector.shape_cast %90 : vector<1x1x32x8xbf16> to vector<32x8xbf16>
    %cst_50 = arith.constant dense<0.000000e+00> : vector<16x8xf32>
    %92 = tpu.matmul %29, %91, %cst_50 {dimension_numbers = #tpu.dot_dimension_numbers<[1], [0], [0], [1], [0, 0, 1, 1], [], []>} : vector<16x32xbf16>, vector<32x8xbf16>, vector<16x8xf32> -> vector<16x8xf32>
    %c0_51 = arith.constant 0 : index
    %c1_52 = arith.constant 1 : index
    %c0_53 = arith.constant 0 : index
    %c0_54 = arith.constant 0 : index
    %93 = vector.load %arg3[%c0_51, %c1_52, %c0_53, %c0_54] : memref<3x4x1x8xf32, #tpu.memory_space<vmem>>, vector<1x1x1x8xf32>
    %94 = vector.shape_cast %93 : vector<1x1x1x8xf32> to vector<1x8xf32>
    %95 = vector.broadcast %94 : vector<1x8xf32> to vector<16x8xf32>
    %96 = arith.addf %92, %95 : vector<16x8xf32>
    %c1_55 = arith.constant 1 : index
    %c1_56 = arith.constant 1 : index
    %c0_57 = arith.constant 0 : index
    %c0_58 = arith.constant 0 : index
    %97 = vector.load %arg2[%c1_55, %c1_56, %c0_57, %c0_58] : memref<3x4x32x8xbf16, #tpu.memory_space<vmem>>, vector<1x1x32x8xbf16>
    %98 = vector.shape_cast %97 : vector<1x1x32x8xbf16> to vector<32x8xbf16>
    %cst_59 = arith.constant dense<0.000000e+00> : vector<16x8xf32>
    %99 = tpu.matmul %29, %98, %cst_59 {dimension_numbers = #tpu.dot_dimension_numbers<[1], [0], [0], [1], [0, 0, 1, 1], [], []>} : vector<16x32xbf16>, vector<32x8xbf16>, vector<16x8xf32> -> vector<16x8xf32>
    %c1_60 = arith.constant 1 : index
    %c1_61 = arith.constant 1 : index
    %c0_62 = arith.constant 0 : index
    %c0_63 = arith.constant 0 : index
    %100 = vector.load %arg3[%c1_60, %c1_61, %c0_62, %c0_63] : memref<3x4x1x8xf32, #tpu.memory_space<vmem>>, vector<1x1x1x8xf32>
    %101 = vector.shape_cast %100 : vector<1x1x1x8xf32> to vector<1x8xf32>
    %102 = vector.broadcast %101 : vector<1x8xf32> to vector<16x8xf32>
    %103 = arith.addf %99, %102 : vector<16x8xf32>
    %c2_64 = arith.constant 2 : index
    %c1_65 = arith.constant 1 : index
    %c0_66 = arith.constant 0 : index
    %c0_67 = arith.constant 0 : index
    %104 = vector.load %arg2[%c2_64, %c1_65, %c0_66, %c0_67] : memref<3x4x32x8xbf16, #tpu.memory_space<vmem>>, vector<1x1x32x8xbf16>
    %105 = vector.shape_cast %104 : vector<1x1x32x8xbf16> to vector<32x8xbf16>
    %cst_68 = arith.constant dense<0.000000e+00> : vector<16x8xf32>
    %106 = tpu.matmul %29, %105, %cst_68 {dimension_numbers = #tpu.dot_dimension_numbers<[1], [0], [0], [1], [0, 0, 1, 1], [], []>} : vector<16x32xbf16>, vector<32x8xbf16>, vector<16x8xf32> -> vector<16x8xf32>
    %c2_69 = arith.constant 2 : index
    %c1_70 = arith.constant 1 : index
    %c0_71 = arith.constant 0 : index
    %c0_72 = arith.constant 0 : index
    %107 = vector.load %arg3[%c2_69, %c1_70, %c0_71, %c0_72] : memref<3x4x1x8xf32, #tpu.memory_space<vmem>>, vector<1x1x1x8xf32>
    %108 = vector.shape_cast %107 : vector<1x1x1x8xf32> to vector<1x8xf32>
    %109 = vector.broadcast %108 : vector<1x8xf32> to vector<16x8xf32>
    %110 = arith.addf %106, %109 : vector<16x8xf32>
    %cst_73 = arith.constant 0.353553385 : f32
    %111 = vector.broadcast %cst_73 : f32 to vector<16x8xf32>
    %112 = arith.mulf %96, %111 : vector<16x8xf32>
    %113 = arith.truncf %112 : vector<16x8xf32> to vector<16x8xbf16>
    %114 = arith.truncf %103 : vector<16x8xf32> to vector<16x8xbf16>
    %cst_74 = arith.constant dense<0.000000e+00> : vector<16x16xf32>
    %115 = tpu.matmul %113, %114, %cst_74 {dimension_numbers = #tpu.dot_dimension_numbers<[1], [1], [0], [0], [0, 0, 1, 0], [], []>} : vector<16x8xbf16>, vector<16x8xbf16>, vector<16x16xf32> -> vector<16x16xf32>
    %cst_75 = arith.constant -1.000000e+30 : f32
    %116 = vector.broadcast %cst_75 : f32 to vector<16x16xf32>
    %117 = arith.select %38, %115, %116 : vector<16x16xi1>, vector<16x16xf32>
    %cst_76 = arith.constant dense<0xFF800000> : vector<16xf32>
    %118 = vector.multi_reduction <maximumf>, %117, %cst_76 [1] : vector<16x16xf32> to vector<16xf32>
    %119 = vector.shape_cast %118 : vector<16xf32> to vector<16x1xf32>
    %120 = vector.broadcast %119 : vector<16x1xf32> to vector<16x16xf32>
    %121 = arith.subf %117, %120 : vector<16x16xf32>
    %122 = math.exp %121 : vector<16x16xf32>
    %cst_77 = arith.constant dense<0.000000e+00> : vector<16xf32>
    %123 = vector.multi_reduction <add>, %122, %cst_77 [1] : vector<16x16xf32> to vector<16xf32>
    %124 = vector.shape_cast %123 : vector<16xf32> to vector<16x1xf32>
    %125 = tpu.reciprocal %124 {approx = true} : vector<16x1xf32> -> vector<16x1xf32>
    %126 = vector.broadcast %125 : vector<16x1xf32> to vector<16x16xf32>
    %127 = arith.mulf %122, %126 : vector<16x16xf32>
    %128 = arith.truncf %127 : vector<16x16xf32> to vector<16x16xbf16>
    %129 = arith.truncf %110 : vector<16x8xf32> to vector<16x8xbf16>
    %cst_78 = arith.constant dense<0.000000e+00> : vector<16x8xf32>
    %130 = tpu.matmul %128, %129, %cst_78 {dimension_numbers = #tpu.dot_dimension_numbers<[1], [0], [0], [1], [0, 0, 1, 1], [], []>} : vector<16x16xbf16>, vector<16x8xbf16>, vector<16x8xf32> -> vector<16x8xf32>
    %131 = arith.truncf %130 : vector<16x8xf32> to vector<16x8xbf16>
    %c1_79 = arith.constant 1 : index
    %c0_80 = arith.constant 0 : index
    %c0_81 = arith.constant 0 : index
    %132 = vector.load %arg4[%c1_79, %c0_80, %c0_81] : memref<4x8x32xbf16, #tpu.memory_space<vmem>>, vector<1x8x32xbf16>
    %133 = vector.shape_cast %132 : vector<1x8x32xbf16> to vector<8x32xbf16>
    %cst_82 = arith.constant dense<0.000000e+00> : vector<16x32xf32>
    %134 = tpu.matmul %131, %133, %cst_82 {dimension_numbers = #tpu.dot_dimension_numbers<[1], [0], [0], [1], [0, 0, 1, 1], [], []>} : vector<16x8xbf16>, vector<8x32xbf16>, vector<16x32xf32> -> vector<16x32xf32>
    %135 = arith.addf %89, %134 : vector<16x32xf32>
    %c0_83 = arith.constant 0 : index
    %c2_84 = arith.constant 2 : index
    %c0_85 = arith.constant 0 : index
    %c0_86 = arith.constant 0 : index
    %136 = vector.load %arg2[%c0_83, %c2_84, %c0_85, %c0_86] : memref<3x4x32x8xbf16, #tpu.memory_space<vmem>>, vector<1x1x32x8xbf16>
    %137 = vector.shape_cast %136 : vector<1x1x32x8xbf16> to vector<32x8xbf16>
    %cst_87 = arith.constant dense<0.000000e+00> : vector<16x8xf32>
    %138 = tpu.matmul %29, %137, %cst_87 {dimension_numbers = #tpu.dot_dimension_numbers<[1], [0], [0], [1], [0, 0, 1, 1], [], []>} : vector<16x32xbf16>, vector<32x8xbf16>, vector<16x8xf32> -> vector<16x8xf32>
    %c0_88 = arith.constant 0 : index
    %c2_89 = arith.constant 2 : index
    %c0_90 = arith.constant 0 : index
    %c0_91 = arith.constant 0 : index
    %139 = vector.load %arg3[%c0_88, %c2_89, %c0_90, %c0_91] : memref<3x4x1x8xf32, #tpu.memory_space<vmem>>, vector<1x1x1x8xf32>
    %140 = vector.shape_cast %139 : vector<1x1x1x8xf32> to vector<1x8xf32>
    %141 = vector.broadcast %140 : vector<1x8xf32> to vector<16x8xf32>
    %142 = arith.addf %138, %141 : vector<16x8xf32>
    %c1_92 = arith.constant 1 : index
    %c2_93 = arith.constant 2 : index
    %c0_94 = arith.constant 0 : index
    %c0_95 = arith.constant 0 : index
    %143 = vector.load %arg2[%c1_92, %c2_93, %c0_94, %c0_95] : memref<3x4x32x8xbf16, #tpu.memory_space<vmem>>, vector<1x1x32x8xbf16>
    %144 = vector.shape_cast %143 : vector<1x1x32x8xbf16> to vector<32x8xbf16>
    %cst_96 = arith.constant dense<0.000000e+00> : vector<16x8xf32>
    %145 = tpu.matmul %29, %144, %cst_96 {dimension_numbers = #tpu.dot_dimension_numbers<[1], [0], [0], [1], [0, 0, 1, 1], [], []>} : vector<16x32xbf16>, vector<32x8xbf16>, vector<16x8xf32> -> vector<16x8xf32>
    %c1_97 = arith.constant 1 : index
    %c2_98 = arith.constant 2 : index
    %c0_99 = arith.constant 0 : index
    %c0_100 = arith.constant 0 : index
    %146 = vector.load %arg3[%c1_97, %c2_98, %c0_99, %c0_100] : memref<3x4x1x8xf32, #tpu.memory_space<vmem>>, vector<1x1x1x8xf32>
    %147 = vector.shape_cast %146 : vector<1x1x1x8xf32> to vector<1x8xf32>
    %148 = vector.broadcast %147 : vector<1x8xf32> to vector<16x8xf32>
    %149 = arith.addf %145, %148 : vector<16x8xf32>
    %c2_101 = arith.constant 2 : index
    %c2_102 = arith.constant 2 : index
    %c0_103 = arith.constant 0 : index
    %c0_104 = arith.constant 0 : index
    %150 = vector.load %arg2[%c2_101, %c2_102, %c0_103, %c0_104] : memref<3x4x32x8xbf16, #tpu.memory_space<vmem>>, vector<1x1x32x8xbf16>
    %151 = vector.shape_cast %150 : vector<1x1x32x8xbf16> to vector<32x8xbf16>
    %cst_105 = arith.constant dense<0.000000e+00> : vector<16x8xf32>
    %152 = tpu.matmul %29, %151, %cst_105 {dimension_numbers = #tpu.dot_dimension_numbers<[1], [0], [0], [1], [0, 0, 1, 1], [], []>} : vector<16x32xbf16>, vector<32x8xbf16>, vector<16x8xf32> -> vector<16x8xf32>
    %c2_106 = arith.constant 2 : index
    %c2_107 = arith.constant 2 : index
    %c0_108 = arith.constant 0 : index
    %c0_109 = arith.constant 0 : index
    %153 = vector.load %arg3[%c2_106, %c2_107, %c0_108, %c0_109] : memref<3x4x1x8xf32, #tpu.memory_space<vmem>>, vector<1x1x1x8xf32>
    %154 = vector.shape_cast %153 : vector<1x1x1x8xf32> to vector<1x8xf32>
    %155 = vector.broadcast %154 : vector<1x8xf32> to vector<16x8xf32>
    %156 = arith.addf %152, %155 : vector<16x8xf32>
    %cst_110 = arith.constant 0.353553385 : f32
    %157 = vector.broadcast %cst_110 : f32 to vector<16x8xf32>
    %158 = arith.mulf %142, %157 : vector<16x8xf32>
    %159 = arith.truncf %158 : vector<16x8xf32> to vector<16x8xbf16>
    %160 = arith.truncf %149 : vector<16x8xf32> to vector<16x8xbf16>
    %cst_111 = arith.constant dense<0.000000e+00> : vector<16x16xf32>
    %161 = tpu.matmul %159, %160, %cst_111 {dimension_numbers = #tpu.dot_dimension_numbers<[1], [1], [0], [0], [0, 0, 1, 0], [], []>} : vector<16x8xbf16>, vector<16x8xbf16>, vector<16x16xf32> -> vector<16x16xf32>
    %cst_112 = arith.constant -1.000000e+30 : f32
    %162 = vector.broadcast %cst_112 : f32 to vector<16x16xf32>
    %163 = arith.select %38, %161, %162 : vector<16x16xi1>, vector<16x16xf32>
    %cst_113 = arith.constant dense<0xFF800000> : vector<16xf32>
    %164 = vector.multi_reduction <maximumf>, %163, %cst_113 [1] : vector<16x16xf32> to vector<16xf32>
    %165 = vector.shape_cast %164 : vector<16xf32> to vector<16x1xf32>
    %166 = vector.broadcast %165 : vector<16x1xf32> to vector<16x16xf32>
    %167 = arith.subf %163, %166 : vector<16x16xf32>
    %168 = math.exp %167 : vector<16x16xf32>
    %cst_114 = arith.constant dense<0.000000e+00> : vector<16xf32>
    %169 = vector.multi_reduction <add>, %168, %cst_114 [1] : vector<16x16xf32> to vector<16xf32>
    %170 = vector.shape_cast %169 : vector<16xf32> to vector<16x1xf32>
    %171 = tpu.reciprocal %170 {approx = true} : vector<16x1xf32> -> vector<16x1xf32>
    %172 = vector.broadcast %171 : vector<16x1xf32> to vector<16x16xf32>
    %173 = arith.mulf %168, %172 : vector<16x16xf32>
    %174 = arith.truncf %173 : vector<16x16xf32> to vector<16x16xbf16>
    %175 = arith.truncf %156 : vector<16x8xf32> to vector<16x8xbf16>
    %cst_115 = arith.constant dense<0.000000e+00> : vector<16x8xf32>
    %176 = tpu.matmul %174, %175, %cst_115 {dimension_numbers = #tpu.dot_dimension_numbers<[1], [0], [0], [1], [0, 0, 1, 1], [], []>} : vector<16x16xbf16>, vector<16x8xbf16>, vector<16x8xf32> -> vector<16x8xf32>
    %177 = arith.truncf %176 : vector<16x8xf32> to vector<16x8xbf16>
    %c2_116 = arith.constant 2 : index
    %c0_117 = arith.constant 0 : index
    %c0_118 = arith.constant 0 : index
    %178 = vector.load %arg4[%c2_116, %c0_117, %c0_118] : memref<4x8x32xbf16, #tpu.memory_space<vmem>>, vector<1x8x32xbf16>
    %179 = vector.shape_cast %178 : vector<1x8x32xbf16> to vector<8x32xbf16>
    %cst_119 = arith.constant dense<0.000000e+00> : vector<16x32xf32>
    %180 = tpu.matmul %177, %179, %cst_119 {dimension_numbers = #tpu.dot_dimension_numbers<[1], [0], [0], [1], [0, 0, 1, 1], [], []>} : vector<16x8xbf16>, vector<8x32xbf16>, vector<16x32xf32> -> vector<16x32xf32>
    %181 = arith.addf %135, %180 : vector<16x32xf32>
    %c0_120 = arith.constant 0 : index
    %c3 = arith.constant 3 : index
    %c0_121 = arith.constant 0 : index
    %c0_122 = arith.constant 0 : index
    %182 = vector.load %arg2[%c0_120, %c3, %c0_121, %c0_122] : memref<3x4x32x8xbf16, #tpu.memory_space<vmem>>, vector<1x1x32x8xbf16>
    %183 = vector.shape_cast %182 : vector<1x1x32x8xbf16> to vector<32x8xbf16>
    %cst_123 = arith.constant dense<0.000000e+00> : vector<16x8xf32>
    %184 = tpu.matmul %29, %183, %cst_123 {dimension_numbers = #tpu.dot_dimension_numbers<[1], [0], [0], [1], [0, 0, 1, 1], [], []>} : vector<16x32xbf16>, vector<32x8xbf16>, vector<16x8xf32> -> vector<16x8xf32>
    %c0_124 = arith.constant 0 : index
    %c3_125 = arith.constant 3 : index
    %c0_126 = arith.constant 0 : index
    %c0_127 = arith.constant 0 : index
    %185 = vector.load %arg3[%c0_124, %c3_125, %c0_126, %c0_127] : memref<3x4x1x8xf32, #tpu.memory_space<vmem>>, vector<1x1x1x8xf32>
    %186 = vector.shape_cast %185 : vector<1x1x1x8xf32> to vector<1x8xf32>
    %187 = vector.broadcast %186 : vector<1x8xf32> to vector<16x8xf32>
    %188 = arith.addf %184, %187 : vector<16x8xf32>
    %c1_128 = arith.constant 1 : index
    %c3_129 = arith.constant 3 : index
    %c0_130 = arith.constant 0 : index
    %c0_131 = arith.constant 0 : index
    %189 = vector.load %arg2[%c1_128, %c3_129, %c0_130, %c0_131] : memref<3x4x32x8xbf16, #tpu.memory_space<vmem>>, vector<1x1x32x8xbf16>
    %190 = vector.shape_cast %189 : vector<1x1x32x8xbf16> to vector<32x8xbf16>
    %cst_132 = arith.constant dense<0.000000e+00> : vector<16x8xf32>
    %191 = tpu.matmul %29, %190, %cst_132 {dimension_numbers = #tpu.dot_dimension_numbers<[1], [0], [0], [1], [0, 0, 1, 1], [], []>} : vector<16x32xbf16>, vector<32x8xbf16>, vector<16x8xf32> -> vector<16x8xf32>
    %c1_133 = arith.constant 1 : index
    %c3_134 = arith.constant 3 : index
    %c0_135 = arith.constant 0 : index
    %c0_136 = arith.constant 0 : index
    %192 = vector.load %arg3[%c1_133, %c3_134, %c0_135, %c0_136] : memref<3x4x1x8xf32, #tpu.memory_space<vmem>>, vector<1x1x1x8xf32>
    %193 = vector.shape_cast %192 : vector<1x1x1x8xf32> to vector<1x8xf32>
    %194 = vector.broadcast %193 : vector<1x8xf32> to vector<16x8xf32>
    %195 = arith.addf %191, %194 : vector<16x8xf32>
    %c2_137 = arith.constant 2 : index
    %c3_138 = arith.constant 3 : index
    %c0_139 = arith.constant 0 : index
    %c0_140 = arith.constant 0 : index
    %196 = vector.load %arg2[%c2_137, %c3_138, %c0_139, %c0_140] : memref<3x4x32x8xbf16, #tpu.memory_space<vmem>>, vector<1x1x32x8xbf16>
    %197 = vector.shape_cast %196 : vector<1x1x32x8xbf16> to vector<32x8xbf16>
    %cst_141 = arith.constant dense<0.000000e+00> : vector<16x8xf32>
    %198 = tpu.matmul %29, %197, %cst_141 {dimension_numbers = #tpu.dot_dimension_numbers<[1], [0], [0], [1], [0, 0, 1, 1], [], []>} : vector<16x32xbf16>, vector<32x8xbf16>, vector<16x8xf32> -> vector<16x8xf32>
    %c2_142 = arith.constant 2 : index
    %c3_143 = arith.constant 3 : index
    %c0_144 = arith.constant 0 : index
    %c0_145 = arith.constant 0 : index
    %199 = vector.load %arg3[%c2_142, %c3_143, %c0_144, %c0_145] : memref<3x4x1x8xf32, #tpu.memory_space<vmem>>, vector<1x1x1x8xf32>
    %200 = vector.shape_cast %199 : vector<1x1x1x8xf32> to vector<1x8xf32>
    %201 = vector.broadcast %200 : vector<1x8xf32> to vector<16x8xf32>
    %202 = arith.addf %198, %201 : vector<16x8xf32>
    %cst_146 = arith.constant 0.353553385 : f32
    %203 = vector.broadcast %cst_146 : f32 to vector<16x8xf32>
    %204 = arith.mulf %188, %203 : vector<16x8xf32>
    %205 = arith.truncf %204 : vector<16x8xf32> to vector<16x8xbf16>
    %206 = arith.truncf %195 : vector<16x8xf32> to vector<16x8xbf16>
    %cst_147 = arith.constant dense<0.000000e+00> : vector<16x16xf32>
    %207 = tpu.matmul %205, %206, %cst_147 {dimension_numbers = #tpu.dot_dimension_numbers<[1], [1], [0], [0], [0, 0, 1, 0], [], []>} : vector<16x8xbf16>, vector<16x8xbf16>, vector<16x16xf32> -> vector<16x16xf32>
    %cst_148 = arith.constant -1.000000e+30 : f32
    %208 = vector.broadcast %cst_148 : f32 to vector<16x16xf32>
    %209 = arith.select %38, %207, %208 : vector<16x16xi1>, vector<16x16xf32>
    %cst_149 = arith.constant dense<0xFF800000> : vector<16xf32>
    %210 = vector.multi_reduction <maximumf>, %209, %cst_149 [1] : vector<16x16xf32> to vector<16xf32>
    %211 = vector.shape_cast %210 : vector<16xf32> to vector<16x1xf32>
    %212 = vector.broadcast %211 : vector<16x1xf32> to vector<16x16xf32>
    %213 = arith.subf %209, %212 : vector<16x16xf32>
    %214 = math.exp %213 : vector<16x16xf32>
    %cst_150 = arith.constant dense<0.000000e+00> : vector<16xf32>
    %215 = vector.multi_reduction <add>, %214, %cst_150 [1] : vector<16x16xf32> to vector<16xf32>
    %216 = vector.shape_cast %215 : vector<16xf32> to vector<16x1xf32>
    %217 = tpu.reciprocal %216 {approx = true} : vector<16x1xf32> -> vector<16x1xf32>
    %218 = vector.broadcast %217 : vector<16x1xf32> to vector<16x16xf32>
    %219 = arith.mulf %214, %218 : vector<16x16xf32>
    %220 = arith.truncf %219 : vector<16x16xf32> to vector<16x16xbf16>
    %221 = arith.truncf %202 : vector<16x8xf32> to vector<16x8xbf16>
    %cst_151 = arith.constant dense<0.000000e+00> : vector<16x8xf32>
    %222 = tpu.matmul %220, %221, %cst_151 {dimension_numbers = #tpu.dot_dimension_numbers<[1], [0], [0], [1], [0, 0, 1, 1], [], []>} : vector<16x16xbf16>, vector<16x8xbf16>, vector<16x8xf32> -> vector<16x8xf32>
    %223 = arith.truncf %222 : vector<16x8xf32> to vector<16x8xbf16>
    %c3_152 = arith.constant 3 : index
    %c0_153 = arith.constant 0 : index
    %c0_154 = arith.constant 0 : index
    %224 = vector.load %arg4[%c3_152, %c0_153, %c0_154] : memref<4x8x32xbf16, #tpu.memory_space<vmem>>, vector<1x8x32xbf16>
    %225 = vector.shape_cast %224 : vector<1x8x32xbf16> to vector<8x32xbf16>
    %cst_155 = arith.constant dense<0.000000e+00> : vector<16x32xf32>
    %226 = tpu.matmul %223, %225, %cst_155 {dimension_numbers = #tpu.dot_dimension_numbers<[1], [0], [0], [1], [0, 0, 1, 1], [], []>} : vector<16x8xbf16>, vector<8x32xbf16>, vector<16x32xf32> -> vector<16x32xf32>
    %227 = arith.addf %181, %226 : vector<16x32xf32>
    %c2_156 = arith.constant 2 : index
    %c0_157 = arith.constant 0 : index
    %228 = vector.load %arg1[%c2_156, %c0_157] : memref<6x32xf32, #tpu.memory_space<vmem>>, vector<1x32xf32>
    %229 = vector.shape_cast %228 : vector<1x32xf32> to vector<32xf32>
    %c3_158 = arith.constant 3 : index
    %c0_159 = arith.constant 0 : index
    %230 = vector.load %arg1[%c3_158, %c0_159] : memref<6x32xf32, #tpu.memory_space<vmem>>, vector<1x32xf32>
    %231 = vector.shape_cast %230 : vector<1x32xf32> to vector<32xf32>
    %cst_160 = arith.constant dense<0.000000e+00> : vector<16xf32>
    %232 = vector.multi_reduction <add>, %227, %cst_160 [1] : vector<16x32xf32> to vector<16xf32>
    %233 = vector.shape_cast %232 : vector<16xf32> to vector<16x1xf32>
    %cst_161 = arith.constant 3.200000e+01 : f32
    %234 = vector.broadcast %cst_161 : f32 to vector<16x1xf32>
    %235 = arith.divf %233, %234 : vector<16x1xf32>
    %236 = vector.broadcast %235 : vector<16x1xf32> to vector<16x32xf32>
    %237 = arith.subf %227, %236 : vector<16x32xf32>
    %238 = arith.mulf %237, %237 : vector<16x32xf32>
    %cst_162 = arith.constant dense<0.000000e+00> : vector<16xf32>
    %239 = vector.multi_reduction <add>, %238, %cst_162 [1] : vector<16x32xf32> to vector<16xf32>
    %240 = vector.shape_cast %239 : vector<16xf32> to vector<16x1xf32>
    %cst_163 = arith.constant 3.200000e+01 : f32
    %241 = vector.broadcast %cst_163 : f32 to vector<16x1xf32>
    %242 = arith.divf %240, %241 : vector<16x1xf32>
    %243 = vector.broadcast %235 : vector<16x1xf32> to vector<16x32xf32>
    %244 = arith.subf %227, %243 : vector<16x32xf32>
    %cst_164 = arith.constant 9.99999974E-6 : f32
    %245 = vector.broadcast %cst_164 : f32 to vector<16x1xf32>
    %246 = arith.addf %242, %245 : vector<16x1xf32>
    %247 = math.rsqrt %246 : vector<16x1xf32>
    %248 = vector.broadcast %247 : vector<16x1xf32> to vector<16x32xf32>
    %249 = arith.mulf %244, %248 : vector<16x32xf32>
    %250 = vector.shape_cast %229 : vector<32xf32> to vector<1x32xf32>
    %251 = vector.broadcast %250 : vector<1x32xf32> to vector<16x32xf32>
    %252 = arith.mulf %249, %251 : vector<16x32xf32>
    %253 = vector.shape_cast %231 : vector<32xf32> to vector<1x32xf32>
    %254 = vector.broadcast %253 : vector<1x32xf32> to vector<16x32xf32>
    %255 = arith.addf %252, %254 : vector<16x32xf32>
    %256 = arith.truncf %255 : vector<16x32xf32> to vector<16x32xbf16>
    %c0_165 = arith.constant 0 : index
    %c0_166 = arith.constant 0 : index
    %257 = vector.load %arg5[%c0_165, %c0_166] : memref<32x128xbf16, #tpu.memory_space<vmem>>, vector<32x128xbf16>
    %cst_167 = arith.constant dense<0.000000e+00> : vector<16x128xf32>
    %258 = tpu.matmul %256, %257, %cst_167 {dimension_numbers = #tpu.dot_dimension_numbers<[1], [0], [0], [1], [0, 0, 1, 1], [], []>} : vector<16x32xbf16>, vector<32x128xbf16>, vector<16x128xf32> -> vector<16x128xf32>
    %c0_168 = arith.constant 0 : index
    %c0_169 = arith.constant 0 : index
    %259 = vector.load %arg6[%c0_168, %c0_169] : memref<1x128xf32, #tpu.memory_space<vmem>>, vector<1x128xf32>
    %260 = vector.shape_cast %259 : vector<1x128xf32> to vector<128xf32>
    %261 = vector.shape_cast %260 : vector<128xf32> to vector<1x128xf32>
    %262 = vector.broadcast %261 : vector<1x128xf32> to vector<16x128xf32>
    %263 = arith.addf %258, %262 : vector<16x128xf32>
    %cst_170 = arith.constant 5.000000e-01 : f32
    %264 = vector.broadcast %cst_170 : f32 to vector<16x128xf32>
    %265 = arith.mulf %264, %263 : vector<16x128xf32>
    %cst_171 = arith.constant 4.471500e-02 : f32
    %266 = vector.broadcast %cst_171 : f32 to vector<16x128xf32>
    %267 = arith.mulf %266, %263 : vector<16x128xf32>
    %268 = arith.mulf %267, %263 : vector<16x128xf32>
    %269 = arith.mulf %268, %263 : vector<16x128xf32>
    %270 = arith.addf %263, %269 : vector<16x128xf32>
    %cst_172 = arith.constant 0.797884583 : f32
    %271 = vector.broadcast %cst_172 : f32 to vector<16x128xf32>
    %272 = arith.mulf %271, %270 : vector<16x128xf32>
    %273 = math.tanh %272 : vector<16x128xf32>
    %cst_173 = arith.constant 1.000000e+00 : f32
    %274 = vector.broadcast %cst_173 : f32 to vector<16x128xf32>
    %275 = arith.addf %274, %273 : vector<16x128xf32>
    %276 = arith.mulf %265, %275 : vector<16x128xf32>
    %277 = arith.truncf %276 : vector<16x128xf32> to vector<16x128xbf16>
    %c0_174 = arith.constant 0 : index
    %c0_175 = arith.constant 0 : index
    %278 = vector.load %arg7[%c0_174, %c0_175] : memref<128x32xbf16, #tpu.memory_space<vmem>>, vector<128x32xbf16>
    %cst_176 = arith.constant dense<0.000000e+00> : vector<16x32xf32>
    %279 = tpu.matmul %277, %278, %cst_176 {dimension_numbers = #tpu.dot_dimension_numbers<[1], [0], [0], [1], [0, 0, 1, 1], [], []>} : vector<16x128xbf16>, vector<128x32xbf16>, vector<16x32xf32> -> vector<16x32xf32>
    %c5 = arith.constant 5 : index
    %c0_177 = arith.constant 0 : index
    %280 = vector.load %arg1[%c5, %c0_177] : memref<6x32xf32, #tpu.memory_space<vmem>>, vector<1x32xf32>
    %281 = vector.shape_cast %280 : vector<1x32xf32> to vector<32xf32>
    %282 = vector.shape_cast %281 : vector<32xf32> to vector<1x32xf32>
    %283 = vector.broadcast %282 : vector<1x32xf32> to vector<16x32xf32>
    %284 = arith.addf %279, %283 : vector<16x32xf32>
    %285 = arith.addf %227, %284 : vector<16x32xf32>
    %c0_178 = arith.constant 0 : index
    %c0_179 = arith.constant 0 : index
    %286 = vector.load %arg8[%c0_178, %c0_179] : memref<16x32xf32, #tpu.memory_space<vmem>>, vector<16x32xf32>
    tpu.vector_store %arg8[%c0_178, %c0_179], %285 {strides = array<i32>} : memref<16x32xf32, #tpu.memory_space<vmem>>, vector<16x32xf32>,
    return
  }
}

</mosaic_0001>

<llo_original>
// kernel: tpu_custom_call.1
$region0: #{tpu_custom_call.1}
  #allocation0 [shape = 'u32[]', space=smem, size = 0x4, offset = 0x4, fixed_abs, tag = 'smem constant byte address 0x4 - core index']
  #allocation1 [shape = 'u32[144,128]{1,0:T(1,128)}', space=vmem, size = 0x12000, scoped, tag = 'internal scratch']
  %s0 = inlined_call_operand.vmem [shape: f32[16,32], index: 0, kind: input, shape index: {}]
  %s1 = inlined_call_operand.vmem [shape: f32[6,32], index: 1, kind: input, shape index: {}]
  %s2 = inlined_call_operand.vmem [shape: bf16[3,4,32,8], index: 2, kind: input, shape index: {}]
  %s3 = inlined_call_operand.vmem [shape: f32[3,4,1,8], index: 3, kind: input, shape index: {}]
  %s4 = inlined_call_operand.vmem [shape: bf16[4,8,32], index: 4, kind: input, shape index: {}]
  %s5 = inlined_call_operand.vmem [shape: bf16[32,128], index: 5, kind: input, shape index: {}]
  %s6 = inlined_call_operand.vmem [shape: f32[1,128], index: 6, kind: input, shape index: {}]
  %s7 = inlined_call_operand.vmem [shape: bf16[128,32], index: 7, kind: input, shape index: {}]
  %s8 = inlined_call_operand.hbm [shape: f32[16,32], index: 8, kind: output, shape index: {}]
  %s9 = sld [smem:[#allocation0]]
  $region42: #{tpu_custom_call.1} parent=0
    _
  %s11 = ssub.s32 1, %s9
  %s12 = scalar_select 0, %s11, %s9
  $region1: #{tpu_custom_call.1} parent=0
    #allocation2 [shape = 'u8[8192]{0}', space=vmem, size = 0x2000, scoped, tag = 'output window, operand 0, single buffered']
    #allocation3 [shape = 's32[1]{0}', space=sflag, size = 0x4, scoped, tag = 'scoped memory for tpu_custom_call.1']
    %13 = vsyncpa [#allocation3], 0
    // Predicated region
    $region2: #{tpu_custom_call.1} parent=1 // pred_check
      _
    $region3: #{tpu_custom_call.1} parent=1 // pred_check_branch
      %15 = sbr.rel (0) target = $region5
    $region4: #{tpu_custom_call.1} parent=1 // pred_region
      _
    $region5: #{tpu_custom_call.1} parent=1 // pred_fallthru
      _
    // Predicated region
    $region6: #{tpu_custom_call.1} parent=1 // pred_check
      _
    $region7: #{tpu_custom_call.1} parent=1 // pred_check_branch
      %17 = sbr.rel (0) target = $region9
    $region8: #{tpu_custom_call.1} parent=1 // pred_region
      _
    $region9: #{tpu_custom_call.1} parent=1 // pred_fallthru
      _
    // Predicated region
    $region10: #{tpu_custom_call.1} parent=1 // pred_check
      _
    $region11: #{tpu_custom_call.1} parent=1 // pred_check_branch
      %19 = sbr.rel (0) target = $region13
    $region12: #{tpu_custom_call.1} parent=1 // pred_region
      _
    $region13: #{tpu_custom_call.1} parent=1 // pred_fallthru
      _
    // Predicated region
    $region14: #{tpu_custom_call.1} parent=1 // pred_check
      _
    $region15: #{tpu_custom_call.1} parent=1 // pred_check_branch
      %21 = sbr.rel (0) target = $region17
    $region16: #{tpu_custom_call.1} parent=1 // pred_region
      _
    $region17: #{tpu_custom_call.1} parent=1 // pred_fallthru
      _
    // Predicated region
    $region18: #{tpu_custom_call.1} parent=1 // pred_check
      _
    $region19: #{tpu_custom_call.1} parent=1 // pred_check_branch
      %23 = sbr.rel (0) target = $region21
    $region20: #{tpu_custom_call.1} parent=1 // pred_region
      _
    $region21: #{tpu_custom_call.1} parent=1 // pred_fallthru
      _
    // Predicated region
    $region22: #{tpu_custom_call.1} parent=1 // pred_check
      _
    $region23: #{tpu_custom_call.1} parent=1 // pred_check_branch
      %25 = sbr.rel (0) target = $region25
    $region24: #{tpu_custom_call.1} parent=1 // pred_region
      _
    $region25: #{tpu_custom_call.1} parent=1 // pred_fallthru
      _
    // Predicated region
    $region26: #{tpu_custom_call.1} parent=1 // pred_check
      _
    $region27: #{tpu_custom_call.1} parent=1 // pred_check_branch
      %27 = sbr.rel (0) target = $region29
    $region28: #{tpu_custom_call.1} parent=1 // pred_region
      _
    $region29: #{tpu_custom_call.1} parent=1 // pred_fallthru
      _
    // Predicated region
    $region30: #{tpu_custom_call.1} parent=1 // pred_check
      _
    $region31: #{tpu_custom_call.1} parent=1 // pred_check_branch
      %29 = sbr.rel (0) target = $region33
    $region32: #{tpu_custom_call.1} parent=1 // pred_region
      _
    $region33: #{tpu_custom_call.1} parent=1 // pred_fallthru
      _
    %v31 = vld [vmem:[%s0] sm:$0xff]
    %v32 = vld [vmem:[%s0 + $0x8] sm:$0xff]
    %v33 = vld [vmem:[%s1] sm:$0x1]
    %v34 = vld [vmem:[%s1 + $0x1] sm:$0x1]
    %vm35 = vcmask 261120
    %v36 = vsel %vm35, %v31, 0.0
    %37 = vadd.xlane.f32.xlu0 %v36
    %v38 = vpop.xlane.xlu0 %37
    %v39 = vsel %vm35, %v32, 0.0
    %40 = vadd.xlane.f32.xlu0 %v39
    %v41 = vpop.xlane.xlu0 %40
    %v42 = vrcp.pop 32.0
    %v43 = vmul.f32 %v38, %v42
    %v44 = vmul.f32 %v41, %v42
    %v45 = vsub.f32 %v31, %v43
    %v46 = vsub.f32 %v32, %v44
    %v47 = vmul.f32 %v45, %v45
    %v48 = vmul.f32 %v46, %v46
    %v49 = vsel %vm35, %v47, 0.0
    %50 = vadd.xlane.f32.xlu0 %v49
    %v51 = vpop.xlane.xlu0 %50
    %v52 = vsel %vm35, %v48, 0.0
    %53 = vadd.xlane.f32.xlu0 %v52
    %v54 = vpop.xlane.xlu0 %53
    %v55 = vmul.f32 %v51, %v42
    %v56 = vmul.f32 %v54, %v42
    %v57 = vadd.f32 %v55, 1e-05
    %v58 = vadd.f32 %v56, 1e-05
    %v59 = vrsqrt.pop %v57
    %v60 = vrsqrt.pop %v58
    %v61 = vmul.f32 %v45, %v59
    %v62 = vmul.f32 %v46, %v60
    %v63 = vlaneseq
    %v64 = vshrl.u32 %v63, 7
    %v65 = vsub.s32 0, %v64
    %v66 = vrot.slane %v33, %v65
    %v67 = vmul.f32 %v61, %v66
    %v68 = vmul.f32 %v62, %v66
    %v69 = vlaneseq
    %v70 = vshrl.u32 %v69, 7
    %v71 = vsub.s32 0, %v70
    %v72 = vrot.slane %v34, %v71
    %v73 = vadd.f32 %v67, %v72
    %v74 = vadd.f32 %v68, %v72
    %v75 = vpack.c.bf16 %v74, %v73
    %v76 = vlaneseq
    %v77 = vshrl.u32 %v76, 7
    %v78 = vadd.s32 %v77, 8
    %v79 = vlaneseq
    %v80 = vand.u32 %v79, 127
    %v81 = vshra.s32 %v77, 3
    %v82 = vshra.s32 %v78, 3
    %v83 = vshra.s32 %v80, 3
    %vm84 = vcmp.eq.s32.totalorder %v81, %v83
    %vm85 = vcmp.eq.s32.totalorder %v82, %v83
    %vm86 = vcmp.le.s32.totalorder %v80, %v77
    %vm87 = vcmp.le.s32.totalorder %v80, %v78
    %vm88 = vmand %vm84, %vm86
    %vm89 = vmand %vm85, %vm87
    %v90 = vld [vmem:[%s1 + $0x4] sm:$0x1]
    %v91 = vlaneseq
    %v92 = vshrl.u32 %v91, 7
    %v93 = vsub.s32 0, %v92
    %v94 = vrot.slane %v90, %v93
    %v95 = vadd.f32 %v31, %v94
    %v96 = vadd.f32 %v32, %v94
    %v97 = vld [vmem:[%s2] sm:$0xf]
    %v98 = vld [vmem:[%s2 + $0x4] sm:$0xf]
    %v99 = vld [vmem:[%s2 + $0x8] sm:$0xf]
    %v100 = vld [vmem:[%s2 + $0xc] sm:$0xf]
    %v101 = vld [vmem:[%s3] sm:$0x1]
    %v103 = vlaneseq
    %v104 = vshrl.u32 %v103, 7
    %v105 = vsub.s32 0, %v104
    %v106 = vrot.slane %v101, %v105
    %v112 = vunpack.c.l.b16 %v97
    %v113 = vunpack.c.l.b16 %v98
    %v114 = vunpack.c.l.b16 %v99
    %v115 = vunpack.c.l.b16 %v100
    %v116 = vpack.c.b16 %v113, %v112
    %v117 = vpack.c.b16 %v115, %v114
    %v121 = vsel %vm35, %v75, 0
    %123 = vmatprep.subr.bf16.mxu0 0
    %124 = vmatpush1.bf16.msra.mxu0 0
    %125 = vmatprep.subr.bf16.mxu0 0
    %126 = vmatpush1.bf16.msra.mxu0 0
    %127 = vmatprep.subr.bf16.mxu0 0
    %128 = vmatpush1.bf16.msra.mxu0 0
    %129 = vmatprep.subr.bf16.mxu0 0
    %130 = vmatpush1.bf16.msra.mxu0 0
    %131 = vmatprep.subr.bf16.mxu0 0
    %132 = vmatpush1.bf16.msra.mxu0 0
    %133 = vmatprep.subr.bf16.mxu0 0
    %134 = vmatpush1.bf16.msra.mxu0 0
    %135 = vmatprep.subr.bf16.mxu0 0
    %136 = vmatpush1.bf16.msra.mxu0 %v117
    %137 = vmatprep.subr.bf16.mxu0 0
    %138 = vmatpush1.bf16.msra.mxu0 %v116
    %139 = vmatprep.subr.bf16.mxu0 0
    %140 = vmatpush2.bf16.msra.mxu0 0
    %141 = vmatprep.subr.bf16.mxu0 0
    %142 = vmatpush2.bf16.msra.mxu0 0
    %143 = vmatprep.subr.bf16.mxu0 0
    %144 = vmatpush2.bf16.msra.mxu0 0
    %145 = vmatprep.subr.bf16.mxu0 0
    %146 = vmatpush2.bf16.msra.mxu0 0
    %147 = vmatprep.subr.bf16.mxu0 0
    %148 = vmatpush2.bf16.msra.mxu0 0
    %149 = vmatprep.subr.bf16.mxu0 0
    %150 = vmatpush2.bf16.msra.mxu0 0
    %151 = vmatprep.subr.bf16.mxu0 0
    %152 = vmatpush2.bf16.msra.mxu0 0
    %153 = vmatprep.subr.bf16.mxu0 0
    %154 = vmatpush2.bf16.msra.mxu0 0
    %155 = vmatprep.mubr.bf16.mxu0 0
    %156 = vmatmul.mubr.bf16.gmra.mxu0 %v121
    %v157 = vpop.f32.mrf.mxu0
    %v158 = vadd.f32 %v106, %v157
    %v159 = vpop.f32.mrf.mxu0
    %v160 = vpop.f32.mrf.mxu0
    %v161 = vadd.f32 %v106, %v160
    %v162 = vpop.f32.mrf.mxu0
    %163 = vdwg.mxu0
    %s164 = scalar_lea.vmem %s2, 64
    %v165 = vld [vmem:[%s164] sm:$0xf]
    %v166 = vld [vmem:[%s164 + $0x4] sm:$0xf]
    %v167 = vld [vmem:[%s164 + $0x8] sm:$0xf]
    %v168 = vld [vmem:[%s164 + $0xc] sm:$0xf]
    %s169 = scalar_lea.vmem %s3, 4
    %v170 = vld [vmem:[%s169] sm:$0x1]
    %v172 = vlaneseq
    %v173 = vshrl.u32 %v172, 7
    %v174 = vsub.s32 0, %v173
    %v175 = vrot.slane %v170, %v174
    %v181 = vunpack.c.l.b16 %v165
    %v182 = vunpack.c.l.b16 %v166
    %v183 = vunpack.c.l.b16 %v167
    %v184 = vunpack.c.l.b16 %v168
    %v185 = vpack.c.b16 %v182, %v181
    %v186 = vpack.c.b16 %v184, %v183
    %189 = vmatprep.subr.bf16.mxu0 0
    %190 = vmatpush1.bf16.msra.mxu0 0
    %191 = vmatprep.subr.bf16.mxu0 0
    %192 = vmatpush1.bf16.msra.mxu0 0
    %193 = vmatprep.subr.bf16.mxu0 0
    %194 = vmatpush1.bf16.msra.mxu0 0
    %195 = vmatprep.subr.bf16.mxu0 0
    %196 = vmatpush1.bf16.msra.mxu0 0
    %197 = vmatprep.subr.bf16.mxu0 0
    %198 = vmatpush1.bf16.msra.mxu0 0
    %199 = vmatprep.subr.bf16.mxu0 0
    %200 = vmatpush1.bf16.msra.mxu0 0
    %201 = vmatprep.subr.bf16.mxu0 0
    %202 = vmatpush1.bf16.msra.mxu0 %v186
    %203 = vmatprep.subr.bf16.mxu0 0
    %204 = vmatpush1.bf16.msra.mxu0 %v185
    %205 = vmatprep.subr.bf16.mxu0 0
    %206 = vmatpush2.bf16.msra.mxu0 0
    %207 = vmatprep.subr.bf16.mxu0 0
    %208 = vmatpush2.bf16.msra.mxu0 0
    %209 = vmatprep.subr.bf16.mxu0 0
    %210 = vmatpush2.bf16.msra.mxu0 0
    %211 = vmatprep.subr.bf16.mxu0 0
    %212 = vmatpush2.bf16.msra.mxu0 0
    %213 = vmatprep.subr.bf16.mxu0 0
    %214 = vmatpush2.bf16.msra.mxu0 0
    %215 = vmatprep.subr.bf16.mxu0 0
    %216 = vmatpush2.bf16.msra.mxu0 0
    %217 = vmatprep.subr.bf16.mxu0 0
    %218 = vmatpush2.bf16.msra.mxu0 0
    %219 = vmatprep.subr.bf16.mxu0 0
    %220 = vmatpush2.bf16.msra.mxu0 0
    %221 = vmatprep.mubr.bf16.mxu0 0
    %222 = vmatmul.mubr.bf16.gmra.mxu0 %v121
    %v223 = vpop.f32.mrf.mxu0
    %v224 = vadd.f32 %v175, %v223
    %v225 = vpop.f32.mrf.mxu0
    %v226 = vpop.f32.mrf.mxu0
    %v227 = vadd.f32 %v175, %v226
    %v228 = vpop.f32.mrf.mxu0
    %229 = vdwg.mxu0
    %s230 = scalar_lea.vmem %s2, 128
    %v231 = vld [vmem:[%s230] sm:$0xf]
    %v232 = vld [vmem:[%s230 + $0x4] sm:$0xf]
    %v233 = vld [vmem:[%s230 + $0x8] sm:$0xf]
    %v234 = vld [vmem:[%s230 + $0xc] sm:$0xf]
    %s235 = scalar_lea.vmem %s3, 8
    %v236 = vld [vmem:[%s235] sm:$0x1]
    %v238 = vlaneseq
    %v239 = vshrl.u32 %v238, 7
    %v240 = vsub.s32 0, %v239
    %v241 = vrot.slane %v236, %v240
    %v247 = vunpack.c.l.b16 %v231
    %v248 = vunpack.c.l.b16 %v232
    %v249 = vunpack.c.l.b16 %v233
    %v250 = vunpack.c.l.b16 %v234
    %v251 = vpack.c.b16 %v248, %v247
    %v252 = vpack.c.b16 %v250, %v249
    %255 = vmatprep.subr.bf16.mxu0 0
    %256 = vmatpush1.bf16.msra.mxu0 0
    %257 = vmatprep.subr.bf16.mxu0 0
    %258 = vmatpush1.bf16.msra.mxu0 0
    %259 = vmatprep.subr.bf16.mxu0 0
    %260 = vmatpush1.bf16.msra.mxu0 0
    %261 = vmatprep.subr.bf16.mxu0 0
    %262 = vmatpush1.bf16.msra.mxu0 0
    %263 = vmatprep.subr.bf16.mxu0 0
    %264 = vmatpush1.bf16.msra.mxu0 0
    %265 = vmatprep.subr.bf16.mxu0 0
    %266 = vmatpush1.bf16.msra.mxu0 0
    %267 = vmatprep.subr.bf16.mxu0 0
    %268 = vmatpush1.bf16.msra.mxu0 %v252
    %269 = vmatprep.subr.bf16.mxu0 0
    %270 = vmatpush1.bf16.msra.mxu0 %v251
    %271 = vmatprep.subr.bf16.mxu0 0
    %272 = vmatpush2.bf16.msra.mxu0 0
    %273 = vmatprep.subr.bf16.mxu0 0
    %274 = vmatpush2.bf16.msra.mxu0 0
    %275 = vmatprep.subr.bf16.mxu0 0
    %276 = vmatpush2.bf16.msra.mxu0 0
    %277 = vmatprep.subr.bf16.mxu0 0
    %278 = vmatpush2.bf16.msra.mxu0 0
    %279 = vmatprep.subr.bf16.mxu0 0
    %280 = vmatpush2.bf16.msra.mxu0 0
    %281 = vmatprep.subr.bf16.mxu0 0
    %282 = vmatpush2.bf16.msra.mxu0 0
    %283 = vmatprep.subr.bf16.mxu0 0
    %284 = vmatpush2.bf16.msra.mxu0 0
    %285 = vmatprep.subr.bf16.mxu0 0
    %286 = vmatpush2.bf16.msra.mxu0 0
    %287 = vmatprep.mubr.bf16.mxu0 0
    %288 = vmatmul.mubr.bf16.gmra.mxu0 %v121
    %v289 = vpop.f32.mrf.mxu0
    %v290 = vadd.f32 %v241, %v289
    %v291 = vpop.f32.mrf.mxu0
    %v292 = vpop.f32.mrf.mxu0
    %v293 = vadd.f32 %v241, %v292
    %v294 = vpop.f32.mrf.mxu0
    %295 = vdwg.mxu0
    %v296 = vmul.f32 %v158, 0.35355338
    %v297 = vmul.f32 %v161, 0.35355338
    %v298 = vpack.c.bf16 %v297, %v296
    %v299 = vpack.c.bf16 %v227, %v224
    %vm300 = vcmask 64512
    %v302 = vsel %vm300, %v298, 0
    %v305 = vsel %vm300, %v299, 0
    %307 = vmatprep.subr.bf16.mxu0 0
    %308 = vmatpush1.bf16.xpose.msra.mxu0 0
    %309 = vmatprep.subr.bf16.mxu0 0
    %310 = vmatpush1.bf16.xpose.msra.mxu0 0
    %311 = vmatprep.subr.bf16.mxu0 0
    %312 = vmatpush1.bf16.xpose.msra.mxu0 0
    %313 = vmatprep.subr.bf16.mxu0 0
    %314 = vmatpush1.bf16.xpose.msra.mxu0 0
    %315 = vmatprep.subr.bf16.mxu0 0
    %316 = vmatpush1.bf16.xpose.msra.mxu0 0
    %317 = vmatprep.subr.bf16.mxu0 0
    %318 = vmatpush1.bf16.xpose.msra.mxu0 0
    %319 = vmatprep.subr.bf16.mxu0 0
    %320 = vmatpush1.bf16.xpose.msra.mxu0 0
    %321 = vmatprep.subr.bf16.mxu0 0
    %322 = vmatpush1.bf16.xpose.msra.mxu0 %v305
    %323 = vmatprep.subr.bf16.mxu0 0
    %324 = vmatpush2.bf16.xpose.msra.mxu0 0
    %325 = vmatprep.subr.bf16.mxu0 0
    %326 = vmatpush2.bf16.xpose.msra.mxu0 0
    %327 = vmatprep.subr.bf16.mxu0 0
    %328 = vmatpush2.bf16.xpose.msra.mxu0 0
    %329 = vmatprep.subr.bf16.mxu0 0
    %330 = vmatpush2.bf16.xpose.msra.mxu0 0
    %331 = vmatprep.subr.bf16.mxu0 0
    %332 = vmatpush2.bf16.xpose.msra.mxu0 0
    %333 = vmatprep.subr.bf16.mxu0 0
    %334 = vmatpush2.bf16.xpose.msra.mxu0 0
    %335 = vmatprep.subr.bf16.mxu0 0
    %336 = vmatpush2.bf16.xpose.msra.mxu0 0
    %337 = vmatprep.subr.bf16.mxu0 0
    %338 = vmatpush2.bf16.xpose.msra.mxu0 0
    %339 = vmatprep.mubr.bf16.mxu0 0
    %340 = vmatmul.mubr.bf16.gmra.mxu0 %v302
    %v341 = vpop.f32.mrf.mxu0
    %v342 = vadd.f32 0.0, %v341
    %v343 = vpop.f32.mrf.mxu0
    %v344 = vpop.f32.mrf.mxu0
    %v345 = vadd.f32 0.0, %v344
    %v346 = vpop.f32.mrf.mxu0
    %347 = vdwg.mxu0
    %v348 = vsel %vm88, %v342, -1e+30
    %v349 = vsel %vm89, %v345, -1e+30
    %vm350 = vcmask 130048
    %v351 = vsel %vm350, %v348, -inf
    %352 = vmax.xlane.f32.xlu0 %v351
    %v353 = vpop.xlane.xlu0 %352
    %v354 = vsel %vm350, %v349, -inf
    %355 = vmax.xlane.f32.xlu0 %v354
    %v356 = vpop.xlane.xlu0 %355
    %v357 = vsub.f32 %v348, %v353
    %v358 = vsub.f32 %v349, %v356
    %v359 = vmul.f32 %v357, 1.442695
    %v360 = vpow.pop %v359
    %v361 = vmul.f32 %v358, 1.442695
    %v362 = vpow.pop %v361
    %v363 = vsel %vm350, %v360, 0.0
    %364 = vadd.xlane.f32.xlu0 %v363
    %v365 = vpop.xlane.xlu0 %364
    %v366 = vsel %vm350, %v362, 0.0
    %367 = vadd.xlane.f32.xlu0 %v366
    %v368 = vpop.xlane.xlu0 %367
    %v369 = vrcp.pop %v365
    %v370 = vrcp.pop %v368
    %v371 = vmul.f32 %v360, %v369
    %v372 = vmul.f32 %v362, %v370
    %v373 = vpack.c.bf16 %v372, %v371
    %v374 = vpack.c.bf16 %v293, %v290
    %v376 = vsel %vm350, %v373, 0
    %378 = vmatprep.subr.bf16.mxu0 0
    %379 = vmatpush1.bf16.msra.mxu0 0
    %380 = vmatprep.subr.bf16.mxu0 0
    %381 = vmatpush1.bf16.msra.mxu0 0
    %382 = vmatprep.subr.bf16.mxu0 0
    %383 = vmatpush1.bf16.msra.mxu0 0
    %384 = vmatprep.subr.bf16.mxu0 0
    %385 = vmatpush1.bf16.msra.mxu0 0
    %386 = vmatprep.subr.bf16.mxu0 0
    %387 = vmatpush1.bf16.msra.mxu0 0
    %388 = vmatprep.subr.bf16.mxu0 0
    %389 = vmatpush1.bf16.msra.mxu0 0
    %390 = vmatprep.subr.bf16.mxu0 0
    %391 = vmatpush1.bf16.msra.mxu0 0
    %392 = vmatprep.subr.bf16.mxu0 0
    %393 = vmatpush1.bf16.msra.mxu0 %v374
    %394 = vmatprep.subr.bf16.mxu0 0
    %395 = vmatpush2.bf16.msra.mxu0 0
    %396 = vmatprep.subr.bf16.mxu0 0
    %397 = vmatpush2.bf16.msra.mxu0 0
    %398 = vmatprep.subr.bf16.mxu0 0
    %399 = vmatpush2.bf16.msra.mxu0 0
    %400 = vmatprep.subr.bf16.mxu0 0
    %401 = vmatpush2.bf16.msra.mxu0 0
    %402 = vmatprep.subr.bf16.mxu0 0
    %403 = vmatpush2.bf16.msra.mxu0 0
    %404 = vmatprep.subr.bf16.mxu0 0
    %405 = vmatpush2.bf16.msra.mxu0 0
    %406 = vmatprep.subr.bf16.mxu0 0
    %407 = vmatpush2.bf16.msra.mxu0 0
    %408 = vmatprep.subr.bf16.mxu0 0
    %409 = vmatpush2.bf16.msra.mxu0 0
    %410 = vmatprep.mubr.bf16.mxu0 0
    %411 = vmatmul.mubr.bf16.gmra.mxu0 %v376
    %v412 = vpop.f32.mrf.mxu0
    %v413 = vadd.f32 0.0, %v412
    %v414 = vpop.f32.mrf.mxu0
    %v415 = vpop.f32.mrf.mxu0
    %v416 = vadd.f32 0.0, %v415
    %v417 = vpop.f32.mrf.mxu0
    %418 = vdwg.mxu0
    %v419 = vpack.c.bf16 %v416, %v413
    %v420 = vld [vmem:[%s4] sm:$0xf]
    %v422 = vsel %vm300, %v419, 0
    %vm424 = vcmask 1043456
    %v426 = vsel %vm424, %v420, 0
    %428 = vmatprep.subr.bf16.mxu0 0
    %429 = vmatpush1.bf16.msra.mxu0 0
    %430 = vmatprep.subr.bf16.mxu0 0
    %431 = vmatpush1.bf16.msra.mxu0 0
    %432 = vmatprep.subr.bf16.mxu0 0
    %433 = vmatpush1.bf16.msra.mxu0 0
    %434 = vmatprep.subr.bf16.mxu0 0
    %435 = vmatpush1.bf16.msra.mxu0 0
    %436 = vmatprep.subr.bf16.mxu0 0
    %437 = vmatpush1.bf16.msra.mxu0 0
    %438 = vmatprep.subr.bf16.mxu0 0
    %439 = vmatpush1.bf16.msra.mxu0 0
    %440 = vmatprep.subr.bf16.mxu0 0
    %441 = vmatpush1.bf16.msra.mxu0 0
    %442 = vmatprep.subr.bf16.mxu0 0
    %443 = vmatpush1.bf16.msra.mxu0 %v426
    %444 = vmatprep.subr.bf16.mxu0 0
    %445 = vmatpush2.bf16.msra.mxu0 0
    %446 = vmatprep.subr.bf16.mxu0 0
    %447 = vmatpush2.bf16.msra.mxu0 0
    %448 = vmatprep.subr.bf16.mxu0 0
    %449 = vmatpush2.bf16.msra.mxu0 0
    %450 = vmatprep.subr.bf16.mxu0 0
    %451 = vmatpush2.bf16.msra.mxu0 0
    %452 = vmatprep.subr.bf16.mxu0 0
    %453 = vmatpush2.bf16.msra.mxu0 0
    %454 = vmatprep.subr.bf16.mxu0 0
    %455 = vmatpush2.bf16.msra.mxu0 0
    %456 = vmatprep.subr.bf16.mxu0 0
    %457 = vmatpush2.bf16.msra.mxu0 0
    %458 = vmatprep.subr.bf16.mxu0 0
    %459 = vmatpush2.bf16.msra.mxu0 0
    %460 = vmatprep.mubr.bf16.mxu0 0
    %461 = vmatmul.mubr.bf16.gmra.mxu0 %v422
    %v462 = vpop.f32.mrf.mxu0
    %v463 = vadd.f32 0.0, %v462
    %v464 = vpop.f32.mrf.mxu0
    %v465 = vpop.f32.mrf.mxu0
    %v466 = vadd.f32 0.0, %v465
    %v467 = vpop.f32.mrf.mxu0
    %468 = vdwg.mxu0
    %v469 = vadd.f32 %v95, %v463
    %v470 = vadd.f32 %v96, %v466
    %s471 = scalar_lea.vmem %s2, 16
    %v472 = vld [vmem:[%s471] sm:$0xf]
    %v473 = vld [vmem:[%s471 + $0x4] sm:$0xf]
    %v474 = vld [vmem:[%s471 + $0x8] sm:$0xf]
    %v475 = vld [vmem:[%s471 + $0xc] sm:$0xf]
    %s476 = scalar_lea.vmem %s3, 1
    %v477 = vld [vmem:[%s476] sm:$0x1]
    %v479 = vlaneseq
    %v480 = vshrl.u32 %v479, 7
    %v481 = vsub.s32 0, %v480
    %v482 = vrot.slane %v477, %v481
    %v488 = vunpack.c.l.b16 %v472
    %v489 = vunpack.c.l.b16 %v473
    %v490 = vunpack.c.l.b16 %v474
    %v491 = vunpack.c.l.b16 %v475
    %v492 = vpack.c.b16 %v489, %v488
    %v493 = vpack.c.b16 %v491, %v490
    %496 = vmatprep.subr.bf16.mxu0 0
    %497 = vmatpush1.bf16.msra.mxu0 0
    %498 = vmatprep.subr.bf16.mxu0 0
    %499 = vmatpush1.bf16.msra.mxu0 0
    %500 = vmatprep.subr.bf16.mxu0 0
    %501 = vmatpush1.bf16.msra.mxu0 0
    %502 = vmatprep.subr.bf16.mxu0 0
    %503 = vmatpush1.bf16.msra.mxu0 0
    %504 = vmatprep.subr.bf16.mxu0 0
    %505 = vmatpush1.bf16.msra.mxu0 0
    %506 = vmatprep.subr.bf16.mxu0 0
    %507 = vmatpush1.bf16.msra.mxu0 0
    %508 = vmatprep.subr.bf16.mxu0 0
    %509 = vmatpush1.bf16.msra.mxu0 %v493
    %510 = vmatprep.subr.bf16.mxu0 0
    %511 = vmatpush1.bf16.msra.mxu0 %v492
    %512 = vmatprep.subr.bf16.mxu0 0
    %513 = vmatpush2.bf16.msra.mxu0 0
    %514 = vmatprep.subr.bf16.mxu0 0
    %515 = vmatpush2.bf16.msra.mxu0 0
    %516 = vmatprep.subr.bf16.mxu0 0
    %517 = vmatpush2.bf16.msra.mxu0 0
    %518 = vmatprep.subr.bf16.mxu0 0
    %519 = vmatpush2.bf16.msra.mxu0 0
    %520 = vmatprep.subr.bf16.mxu0 0
    %521 = vmatpush2.bf16.msra.mxu0 0
    %522 = vmatprep.subr.bf16.mxu0 0
    %523 = vmatpush2.bf16.msra.mxu0 0
    %524 = vmatprep.subr.bf16.mxu0 0
    %525 = vmatpush2.bf16.msra.mxu0 0
    %526 = vmatprep.subr.bf16.mxu0 0
    %527 = vmatpush2.bf16.msra.mxu0 0
    %528 = vmatprep.mubr.bf16.mxu0 0
    %529 = vmatmul.mubr.bf16.gmra.mxu0 %v121
    %v530 = vpop.f32.mrf.mxu0
    %v531 = vadd.f32 %v482, %v530
    %v532 = vpop.f32.mrf.mxu0
    %v533 = vpop.f32.mrf.mxu0
    %v534 = vadd.f32 %v482, %v533
    %v535 = vpop.f32.mrf.mxu0
    %536 = vdwg.mxu0
    %s537 = scalar_lea.vmem %s2, 80
    %v538 = vld [vmem:[%s537] sm:$0xf]
    %v539 = vld [vmem:[%s537 + $0x4] sm:$0xf]
    %v540 = vld [vmem:[%s537 + $0x8] sm:$0xf]
    %v541 = vld [vmem:[%s537 + $0xc] sm:$0xf]
    %s542 = scalar_lea.vmem %s3, 5
    %v543 = vld [vmem:[%s542] sm:$0x1]
    %v545 = vlaneseq
    %v546 = vshrl.u32 %v545, 7
    %v547 = vsub.s32 0, %v546
    %v548 = vrot.slane %v543, %v547
    %v554 = vunpack.c.l.b16 %v538
    %v555 = vunpack.c.l.b16 %v539
    %v556 = vunpack.c.l.b16 %v540
    %v557 = vunpack.c.l.b16 %v541
    %v558 = vpack.c.b16 %v555, %v554
    %v559 = vpack.c.b16 %v557, %v556
    %562 = vmatprep.subr.bf16.mxu0 0
    %563 = vmatpush1.bf16.msra.mxu0 0
    %564 = vmatprep.subr.bf16.mxu0 0
    %565 = vmatpush1.bf16.msra.mxu0 0
    %566 = vmatprep.subr.bf16.mxu0 0
    %567 = vmatpush1.bf16.msra.mxu0 0
    %568 = vmatprep.subr.bf16.mxu0 0
    %569 = vmatpush1.bf16.msra.mxu0 0
    %570 = vmatprep.subr.bf16.mxu0 0
    %571 = vmatpush1.bf16.msra.mxu0 0
    %572 = vmatprep.subr.bf16.mxu0 0
    %573 = vmatpush1.bf16.msra.mxu0 0
    %574 = vmatprep.subr.bf16.mxu0 0
    %575 = vmatpush1.bf16.msra.mxu0 %v559
    %576 = vmatprep.subr.bf16.mxu0 0
    %577 = vmatpush1.bf16.msra.mxu0 %v558
    %578 = vmatprep.subr.bf16.mxu0 0
    %579 = vmatpush2.bf16.msra.mxu0 0
    %580 = vmatprep.subr.bf16.mxu0 0
    %581 = vmatpush2.bf16.msra.mxu0 0
    %582 = vmatprep.subr.bf16.mxu0 0
    %583 = vmatpush2.bf16.msra.mxu0 0
    %584 = vmatprep.subr.bf16.mxu0 0
    %585 = vmatpush2.bf16.msra.mxu0 0
    %586 = vmatprep.subr.bf16.mxu0 0
    %587 = vmatpush2.bf16.msra.mxu0 0
    %588 = vmatprep.subr.bf16.mxu0 0
    %589 = vmatpush2.bf16.msra.mxu0 0
    %590 = vmatprep.subr.bf16.mxu0 0
    %591 = vmatpush2.bf16.msra.mxu0 0
    %592 = vmatprep.subr.bf16.mxu0 0
    %593 = vmatpush2.bf16.msra.mxu0 0
    %594 = vmatprep.mubr.bf16.mxu0 0
    %595 = vmatmul.mubr.bf16.gmra.mxu0 %v121
    %v596 = vpop.f32.mrf.mxu0
    %v597 = vadd.f32 %v548, %v596
    %v598 = vpop.f32.mrf.mxu0
    %v599 = vpop.f32.mrf.mxu0
    %v600 = vadd.f32 %v548, %v599
    %v601 = vpop.f32.mrf.mxu0
    %602 = vdwg.mxu0
    %s603 = scalar_lea.vmem %s2, 144
    %v604 = vld [vmem:[%s603] sm:$0xf]
    %v605 = vld [vmem:[%s603 + $0x4] sm:$0xf]
    %v606 = vld [vmem:[%s603 + $0x8] sm:$0xf]
    %v607 = vld [vmem:[%s603 + $0xc] sm:$0xf]
    %s608 = scalar_lea.vmem %s3, 9
    %v609 = vld [vmem:[%s608] sm:$0x1]
    %v611 = vlaneseq
    %v612 = vshrl.u32 %v611, 7
    %v613 = vsub.s32 0, %v612
    %v614 = vrot.slane %v609, %v613
    %v620 = vunpack.c.l.b16 %v604
    %v621 = vunpack.c.l.b16 %v605
    %v622 = vunpack.c.l.b16 %v606
    %v623 = vunpack.c.l.b16 %v607
    %v624 = vpack.c.b16 %v621, %v620
    %v625 = vpack.c.b16 %v623, %v622
    %628 = vmatprep.subr.bf16.mxu0 0
    %629 = vmatpush1.bf16.msra.mxu0 0
    %630 = vmatprep.subr.bf16.mxu0 0
    %631 = vmatpush1.bf16.msra.mxu0 0
    %632 = vmatprep.subr.bf16.mxu0 0
    %633 = vmatpush1.bf16.msra.mxu0 0
    %634 = vmatprep.subr.bf16.mxu0 0
    %635 = vmatpush1.bf16.msra.mxu0 0
    %636 = vmatprep.subr.bf16.mxu0 0
    %637 = vmatpush1.bf16.msra.mxu0 0
    %638 = vmatprep.subr.bf16.mxu0 0
    %639 = vmatpush1.bf16.msra.mxu0 0
    %640 = vmatprep.subr.bf16.mxu0 0
    %641 = vmatpush1.bf16.msra.mxu0 %v625
    %642 = vmatprep.subr.bf16.mxu0 0
    %643 = vmatpush1.bf16.msra.mxu0 %v624
    %644 = vmatprep.subr.bf16.mxu0 0
    %645 = vmatpush2.bf16.msra.mxu0 0
    %646 = vmatprep.subr.bf16.mxu0 0
    %647 = vmatpush2.bf16.msra.mxu0 0
    %648 = vmatprep.subr.bf16.mxu0 0
    %649 = vmatpush2.bf16.msra.mxu0 0
    %650 = vmatprep.subr.bf16.mxu0 0
    %651 = vmatpush2.bf16.msra.mxu0 0
    %652 = vmatprep.subr.bf16.mxu0 0
    %653 = vmatpush2.bf16.msra.mxu0 0
    %654 = vmatprep.subr.bf16.mxu0 0
    %655 = vmatpush2.bf16.msra.mxu0 0
    %656 = vmatprep.subr.bf16.mxu0 0
    %657 = vmatpush2.bf16.msra.mxu0 0
    %658 = vmatprep.subr.bf16.mxu0 0
    %659 = vmatpush2.bf16.msra.mxu0 0
    %660 = vmatprep.mubr.bf16.mxu0 0
    %661 = vmatmul.mubr.bf16.gmra.mxu0 %v121
    %v662 = vpop.f32.mrf.mxu0
    %v663 = vadd.f32 %v614, %v662
    %v664 = vpop.f32.mrf.mxu0
    %v665 = vpop.f32.mrf.mxu0
    %v666 = vadd.f32 %v614, %v665
    %v667 = vpop.f32.mrf.mxu0
    %668 = vdwg.mxu0
    %v669 = vmul.f32 %v531, 0.35355338
    %v670 = vmul.f32 %v534, 0.35355338
    %v671 = vpack.c.bf16 %v670, %v669
    %v672 = vpack.c.bf16 %v600, %v597
    %v674 = vsel %vm300, %v671, 0
    %v677 = vsel %vm300, %v672, 0
    %679 = vmatprep.subr.bf16.mxu0 0
    %680 = vmatpush1.bf16.xpose.msra.mxu0 0
    %681 = vmatprep.subr.bf16.mxu0 0
    %682 = vmatpush1.bf16.xpose.msra.mxu0 0
    %683 = vmatprep.subr.bf16.mxu0 0
    %684 = vmatpush1.bf16.xpose.msra.mxu0 0
    %685 = vmatprep.subr.bf16.mxu0 0
    %686 = vmatpush1.bf16.xpose.msra.mxu0 0
    %687 = vmatprep.subr.bf16.mxu0 0
    %688 = vmatpush1.bf16.xpose.msra.mxu0 0
    %689 = vmatprep.subr.bf16.mxu0 0
    %690 = vmatpush1.bf16.xpose.msra.mxu0 0
    %691 = vmatprep.subr.bf16.mxu0 0
    %692 = vmatpush1.bf16.xpose.msra.mxu0 0
    %693 = vmatprep.subr.bf16.mxu0 0
    %694 = vmatpush1.bf16.xpose.msra.mxu0 %v677
    %695 = vmatprep.subr.bf16.mxu0 0
    %696 = vmatpush2.bf16.xpose.msra.mxu0 0
    %697 = vmatprep.subr.bf16.mxu0 0
    %698 = vmatpush2.bf16.xpose.msra.mxu0 0
    %699 = vmatprep.subr.bf16.mxu0 0
    %700 = vmatpush2.bf16.xpose.msra.mxu0 0
    %701 = vmatprep.subr.bf16.mxu0 0
    %702 = vmatpush2.bf16.xpose.msra.mxu0 0
    %703 = vmatprep.subr.bf16.mxu0 0
    %704 = vmatpush2.bf16.xpose.msra.mxu0 0
    %705 = vmatprep.subr.bf16.mxu0 0
    %706 = vmatpush2.bf16.xpose.msra.mxu0 0
    %707 = vmatprep.subr.bf16.mxu0 0
    %708 = vmatpush2.bf16.xpose.msra.mxu0 0
    %709 = vmatprep.subr.bf16.mxu0 0
    %710 = vmatpush2.bf16.xpose.msra.mxu0 0
    %711 = vmatprep.mubr.bf16.mxu0 0
    %712 = vmatmul.mubr.bf16.gmra.mxu0 %v674
    %v713 = vpop.f32.mrf.mxu0
    %v714 = vadd.f32 0.0, %v713
    %v715 = vpop.f32.mrf.mxu0
    %v716 = vpop.f32.mrf.mxu0
    %v717 = vadd.f32 0.0, %v716
    %v718 = vpop.f32.mrf.mxu0
    %719 = vdwg.mxu0
    %v720 = vsel %vm88, %v714, -1e+30
    %v721 = vsel %vm89, %v717, -1e+30
    %v722 = vsel %vm350, %v720, -inf
    %723 = vmax.xlane.f32.xlu0 %v722
    %v724 = vpop.xlane.xlu0 %723
    %v725 = vsel %vm350, %v721, -inf
    %726 = vmax.xlane.f32.xlu0 %v725
    %v727 = vpop.xlane.xlu0 %726
    %v728 = vsub.f32 %v720, %v724
    %v729 = vsub.f32 %v721, %v727
    %v730 = vmul.f32 %v728, 1.442695
    %v731 = vpow.pop %v730
    %v732 = vmul.f32 %v729, 1.442695
    %v733 = vpow.pop %v732
    %v734 = vsel %vm350, %v731, 0.0
    %735 = vadd.xlane.f32.xlu0 %v734
    %v736 = vpop.xlane.xlu0 %735
    %v737 = vsel %vm350, %v733, 0.0
    %738 = vadd.xlane.f32.xlu0 %v737
    %v739 = vpop.xlane.xlu0 %738
    %v740 = vrcp.pop %v736
    %v741 = vrcp.pop %v739
    %v742 = vmul.f32 %v731, %v740
    %v743 = vmul.f32 %v733, %v741
    %v744 = vpack.c.bf16 %v743, %v742
    %v745 = vpack.c.bf16 %v666, %v663
    %v747 = vsel %vm350, %v744, 0
    %749 = vmatprep.subr.bf16.mxu0 0
    %750 = vmatpush1.bf16.msra.mxu0 0
    %751 = vmatprep.subr.bf16.mxu0 0
    %752 = vmatpush1.bf16.msra.mxu0 0
    %753 = vmatprep.subr.bf16.mxu0 0
    %754 = vmatpush1.bf16.msra.mxu0 0
    %755 = vmatprep.subr.bf16.mxu0 0
    %756 = vmatpush1.bf16.msra.mxu0 0
    %757 = vmatprep.subr.bf16.mxu0 0
    %758 = vmatpush1.bf16.msra.mxu0 0
    %759 = vmatprep.subr.bf16.mxu0 0
    %760 = vmatpush1.bf16.msra.mxu0 0
    %761 = vmatprep.subr.bf16.mxu0 0
    %762 = vmatpush1.bf16.msra.mxu0 0
    %763 = vmatprep.subr.bf16.mxu0 0
    %764 = vmatpush1.bf16.msra.mxu0 %v745
    %765 = vmatprep.subr.bf16.mxu0 0
    %766 = vmatpush2.bf16.msra.mxu0 0
    %767 = vmatprep.subr.bf16.mxu0 0
    %768 = vmatpush2.bf16.msra.mxu0 0
    %769 = vmatprep.subr.bf16.mxu0 0
    %770 = vmatpush2.bf16.msra.mxu0 0
    %771 = vmatprep.subr.bf16.mxu0 0
    %772 = vmatpush2.bf16.msra.mxu0 0
    %773 = vmatprep.subr.bf16.mxu0 0
    %774 = vmatpush2.bf16.msra.mxu0 0
    %775 = vmatprep.subr.bf16.mxu0 0
    %776 = vmatpush2.bf16.msra.mxu0 0
    %777 = vmatprep.subr.bf16.mxu0 0
    %778 = vmatpush2.bf16.msra.mxu0 0
    %779 = vmatprep.subr.bf16.mxu0 0
    %780 = vmatpush2.bf16.msra.mxu0 0
    %781 = vmatprep.mubr.bf16.mxu0 0
    %782 = vmatmul.mubr.bf16.gmra.mxu0 %v747
    %v783 = vpop.f32.mrf.mxu0
    %v784 = vadd.f32 0.0, %v783
    %v785 = vpop.f32.mrf.mxu0
    %v786 = vpop.f32.mrf.mxu0
    %v787 = vadd.f32 0.0, %v786
    %v788 = vpop.f32.mrf.mxu0
    %789 = vdwg.mxu0
    %v790 = vpack.c.bf16 %v787, %v784
    %s791 = scalar_lea.vmem %s4, 4
    %v792 = vld [vmem:[%s791] sm:$0xf]
    %v794 = vsel %vm300, %v790, 0
    %v797 = vsel %vm424, %v792, 0
    %799 = vmatprep.subr.bf16.mxu0 0
    %800 = vmatpush1.bf16.msra.mxu0 0
    %801 = vmatprep.subr.bf16.mxu0 0
    %802 = vmatpush1.bf16.msra.mxu0 0
    %803 = vmatprep.subr.bf16.mxu0 0
    %804 = vmatpush1.bf16.msra.mxu0 0
    %805 = vmatprep.subr.bf16.mxu0 0
    %806 = vmatpush1.bf16.msra.mxu0 0
    %807 = vmatprep.subr.bf16.mxu0 0
    %808 = vmatpush1.bf16.msra.mxu0 0
    %809 = vmatprep.subr.bf16.mxu0 0
    %810 = vmatpush1.bf16.msra.mxu0 0
    %811 = vmatprep.subr.bf16.mxu0 0
    %812 = vmatpush1.bf16.msra.mxu0 0
    %813 = vmatprep.subr.bf16.mxu0 0
    %814 = vmatpush1.bf16.msra.mxu0 %v797
    %815 = vmatprep.subr.bf16.mxu0 0
    %816 = vmatpush2.bf16.msra.mxu0 0
    %817 = vmatprep.subr.bf16.mxu0 0
    %818 = vmatpush2.bf16.msra.mxu0 0
    %819 = vmatprep.subr.bf16.mxu0 0
    %820 = vmatpush2.bf16.msra.mxu0 0
    %821 = vmatprep.subr.bf16.mxu0 0
    %822 = vmatpush2.bf16.msra.mxu0 0
    %823 = vmatprep.subr.bf16.mxu0 0
    %824 = vmatpush2.bf16.msra.mxu0 0
    %825 = vmatprep.subr.bf16.mxu0 0
    %826 = vmatpush2.bf16.msra.mxu0 0
    %827 = vmatprep.subr.bf16.mxu0 0
    %828 = vmatpush2.bf16.msra.mxu0 0
    %829 = vmatprep.subr.bf16.mxu0 0
    %830 = vmatpush2.bf16.msra.mxu0 0
    %831 = vmatprep.mubr.bf16.mxu0 0
    %832 = vmatmul.mubr.bf16.gmra.mxu0 %v794
    %v833 = vpop.f32.mrf.mxu0
    %v834 = vadd.f32 0.0, %v833
    %v835 = vpop.f32.mrf.mxu0
    %v836 = vpop.f32.mrf.mxu0
    %v837 = vadd.f32 0.0, %v836
    %v838 = vpop.f32.mrf.mxu0
    %839 = vdwg.mxu0
    %v840 = vadd.f32 %v469, %v834
    %v841 = vadd.f32 %v470, %v837
    %s842 = scalar_lea.vmem %s2, 32
    %v843 = vld [vmem:[%s842] sm:$0xf]
    %v844 = vld [vmem:[%s842 + $0x4] sm:$0xf]
    %v845 = vld [vmem:[%s842 + $0x8] sm:$0xf]
    %v846 = vld [vmem:[%s842 + $0xc] sm:$0xf]
    %s847 = scalar_lea.vmem %s3, 2
    %v848 = vld [vmem:[%s847] sm:$0x1]
    %v850 = vlaneseq
    %v851 = vshrl.u32 %v850, 7
    %v852 = vsub.s32 0, %v851
    %v853 = vrot.slane %v848, %v852
    %v859 = vunpack.c.l.b16 %v843
    %v860 = vunpack.c.l.b16 %v844
    %v861 = vunpack.c.l.b16 %v845
    %v862 = vunpack.c.l.b16 %v846
    %v863 = vpack.c.b16 %v860, %v859
    %v864 = vpack.c.b16 %v862, %v861
    %867 = vmatprep.subr.bf16.mxu0 0
    %868 = vmatpush1.bf16.msra.mxu0 0
    %869 = vmatprep.subr.bf16.mxu0 0
    %870 = vmatpush1.bf16.msra.mxu0 0
    %871 = vmatprep.subr.bf16.mxu0 0
    %872 = vmatpush1.bf16.msra.mxu0 0
    %873 = vmatprep.subr.bf16.mxu0 0
    %874 = vmatpush1.bf16.msra.mxu0 0
    %875 = vmatprep.subr.bf16.mxu0 0
    %876 = vmatpush1.bf16.msra.mxu0 0
    %877 = vmatprep.subr.bf16.mxu0 0
    %878 = vmatpush1.bf16.msra.mxu0 0
    %879 = vmatprep.subr.bf16.mxu0 0
    %880 = vmatpush1.bf16.msra.mxu0 %v864
    %881 = vmatprep.subr.bf16.mxu0 0
    %882 = vmatpush1.bf16.msra.mxu0 %v863
    %883 = vmatprep.subr.bf16.mxu0 0
    %884 = vmatpush2.bf16.msra.mxu0 0
    %885 = vmatprep.subr.bf16.mxu0 0
    %886 = vmatpush2.bf16.msra.mxu0 0
    %887 = vmatprep.subr.bf16.mxu0 0
    %888 = vmatpush2.bf16.msra.mxu0 0
    %889 = vmatprep.subr.bf16.mxu0 0
    %890 = vmatpush2.bf16.msra.mxu0 0
    %891 = vmatprep.subr.bf16.mxu0 0
    %892 = vmatpush2.bf16.msra.mxu0 0
    %893 = vmatprep.subr.bf16.mxu0 0
    %894 = vmatpush2.bf16.msra.mxu0 0
    %895 = vmatprep.subr.bf16.mxu0 0
    %896 = vmatpush2.bf16.msra.mxu0 0
    %897 = vmatprep.subr.bf16.mxu0 0
    %898 = vmatpush2.bf16.msra.mxu0 0
    %899 = vmatprep.mubr.bf16.mxu0 0
    %900 = vmatmul.mubr.bf16.gmra.mxu0 %v121
    %v901 = vpop.f32.mrf.mxu0
    %v902 = vadd.f32 %v853, %v901
    %v903 = vpop.f32.mrf.mxu0
    %v904 = vpop.f32.mrf.mxu0
    %v905 = vadd.f32 %v853, %v904
    %v906 = vpop.f32.mrf.mxu0
    %907 = vdwg.mxu0
    %s908 = scalar_lea.vmem %s2, 96
    %v909 = vld [vmem:[%s908] sm:$0xf]
    %v910 = vld [vmem:[%s908 + $0x4] sm:$0xf]
    %v911 = vld [vmem:[%s908 + $0x8] sm:$0xf]
    %v912 = vld [vmem:[%s908 + $0xc] sm:$0xf]
    %s913 = scalar_lea.vmem %s3, 6
    %v914 = vld [vmem:[%s913] sm:$0x1]
    %v916 = vlaneseq
    %v917 = vshrl.u32 %v916, 7
    %v918 = vsub.s32 0, %v917
    %v919 = vrot.slane %v914, %v918
    %v925 = vunpack.c.l.b16 %v909
    %v926 = vunpack.c.l.b16 %v910
    %v927 = vunpack.c.l.b16 %v911
    %v928 = vunpack.c.l.b16 %v912
    %v929 = vpack.c.b16 %v926, %v925
    %v930 = vpack.c.b16 %v928, %v927
    %933 = vmatprep.subr.bf16.mxu0 0
    %934 = vmatpush1.bf16.msra.mxu0 0
    %935 = vmatprep.subr.bf16.mxu0 0
    %936 = vmatpush1.bf16.msra.mxu0 0
    %937 = vmatprep.subr.bf16.mxu0 0
    %938 = vmatpush1.bf16.msra.mxu0 0
    %939 = vmatprep.subr.bf16.mxu0 0
    %940 = vmatpush1.bf16.msra.mxu0 0
    %941 = vmatprep.subr.bf16.mxu0 0
    %942 = vmatpush1.bf16.msra.mxu0 0
    %943 = vmatprep.subr.bf16.mxu0 0
    %944 = vmatpush1.bf16.msra.mxu0 0
    %945 = vmatprep.subr.bf16.mxu0 0
    %946 = vmatpush1.bf16.msra.mxu0 %v930
    %947 = vmatprep.subr.bf16.mxu0 0
    %948 = vmatpush1.bf16.msra.mxu0 %v929
    %949 = vmatprep.subr.bf16.mxu0 0
    %950 = vmatpush2.bf16.msra.mxu0 0
    %951 = vmatprep.subr.bf16.mxu0 0
    %952 = vmatpush2.bf16.msra.mxu0 0
    %953 = vmatprep.subr.bf16.mxu0 0
    %954 = vmatpush2.bf16.msra.mxu0 0
    %955 = vmatprep.subr.bf16.mxu0 0
    %956 = vmatpush2.bf16.msra.mxu0 0
    %957 = vmatprep.subr.bf16.mxu0 0
    %958 = vmatpush2.bf16.msra.mxu0 0
    %959 = vmatprep.subr.bf16.mxu0 0
    %960 = vmatpush2.bf16.msra.mxu0 0
    %961 = vmatprep.subr.bf16.mxu0 0
    %962 = vmatpush2.bf16.msra.mxu0 0
    %963 = vmatprep.subr.bf16.mxu0 0
    %964 = vmatpush2.bf16.msra.mxu0 0
    %965 = vmatprep.mubr.bf16.mxu0 0
    %966 = vmatmul.mubr.bf16.gmra.mxu0 %v121
    %v967 = vpop.f32.mrf.mxu0
    %v968 = vadd.f32 %v919, %v967
    %v969 = vpop.f32.mrf.mxu0
    %v970 = vpop.f32.mrf.mxu0
    %v971 = vadd.f32 %v919, %v970
    %v972 = vpop.f32.mrf.mxu0
    %973 = vdwg.mxu0
    %s974 = scalar_lea.vmem %s2, 160
    %v975 = vld [vmem:[%s974] sm:$0xf]
    %v976 = vld [vmem:[%s974 + $0x4] sm:$0xf]
    %v977 = vld [vmem:[%s974 + $0x8] sm:$0xf]
    %v978 = vld [vmem:[%s974 + $0xc] sm:$0xf]
    %s979 = scalar_lea.vmem %s3, 10
    %v980 = vld [vmem:[%s979] sm:$0x1]
    %v982 = vlaneseq
    %v983 = vshrl.u32 %v982, 7
    %v984 = vsub.s32 0, %v983
    %v985 = vrot.slane %v980, %v984
    %v991 = vunpack.c.l.b16 %v975
    %v992 = vunpack.c.l.b16 %v976
    %v993 = vunpack.c.l.b16 %v977
    %v994 = vunpack.c.l.b16 %v978
    %v995 = vpack.c.b16 %v992, %v991
    %v996 = vpack.c.b16 %v994, %v993
    %999 = vmatprep.subr.bf16.mxu0 0
    %1000 = vmatpush1.bf16.msra.mxu0 0
    %1001 = vmatprep.subr.bf16.mxu0 0
    %1002 = vmatpush1.bf16.msra.mxu0 0
    %1003 = vmatprep.subr.bf16.mxu0 0
    %1004 = vmatpush1.bf16.msra.mxu0 0
    %1005 = vmatprep.subr.bf16.mxu0 0
    %1006 = vmatpush1.bf16.msra.mxu0 0
    %1007 = vmatprep.subr.bf16.mxu0 0
    %1008 = vmatpush1.bf16.msra.mxu0 0
    %1009 = vmatprep.subr.bf16.mxu0 0
    %1010 = vmatpush1.bf16.msra.mxu0 0
    %1011 = vmatprep.subr.bf16.mxu0 0
    %1012 = vmatpush1.bf16.msra.mxu0 %v996
    %1013 = vmatprep.subr.bf16.mxu0 0
    %1014 = vmatpush1.bf16.msra.mxu0 %v995
    %1015 = vmatprep.subr.bf16.mxu0 0
    %1016 = vmatpush2.bf16.msra.mxu0 0
    %1017 = vmatprep.subr.bf16.mxu0 0
    %1018 = vmatpush2.bf16.msra.mxu0 0
    %1019 = vmatprep.subr.bf16.mxu0 0
    %1020 = vmatpush2.bf16.msra.mxu0 0
    %1021 = vmatprep.subr.bf16.mxu0 0
    %1022 = vmatpush2.bf16.msra.mxu0 0
    %1023 = vmatprep.subr.bf16.mxu0 0
    %1024 = vmatpush2.bf16.msra.mxu0 0
    %1025 = vmatprep.subr.bf16.mxu0 0
    %1026 = vmatpush2.bf16.msra.mxu0 0
    %1027 = vmatprep.subr.bf16.mxu0 0
    %1028 = vmatpush2.bf16.msra.mxu0 0
    %1029 = vmatprep.subr.bf16.mxu0 0
    %1030 = vmatpush2.bf16.msra.mxu0 0
    %1031 = vmatprep.mubr.bf16.mxu0 0
    %1032 = vmatmul.mubr.bf16.gmra.mxu0 %v121
    %v1033 = vpop.f32.mrf.mxu0
    %v1034 = vadd.f32 %v985, %v1033
    %v1035 = vpop.f32.mrf.mxu0
    %v1036 = vpop.f32.mrf.mxu0
    %v1037 = vadd.f32 %v985, %v1036
    %v1038 = vpop.f32.mrf.mxu0
    %1039 = vdwg.mxu0
    %v1040 = vmul.f32 %v902, 0.35355338
    %v1041 = vmul.f32 %v905, 0.35355338
    %v1042 = vpack.c.bf16 %v1041, %v1040
    %v1043 = vpack.c.bf16 %v971, %v968
    %v1045 = vsel %vm300, %v1042, 0
    %v1048 = vsel %vm300, %v1043, 0
    %1050 = vmatprep.subr.bf16.mxu0 0
    %1051 = vmatpush1.bf16.xpose.msra.mxu0 0
    %1052 = vmatprep.subr.bf16.mxu0 0
    %1053 = vmatpush1.bf16.xpose.msra.mxu0 0
    %1054 = vmatprep.subr.bf16.mxu0 0
    %1055 = vmatpush1.bf16.xpose.msra.mxu0 0
    %1056 = vmatprep.subr.bf16.mxu0 0
    %1057 = vmatpush1.bf16.xpose.msra.mxu0 0
    %1058 = vmatprep.subr.bf16.mxu0 0
    %1059 = vmatpush1.bf16.xpose.msra.mxu0 0
    %1060 = vmatprep.subr.bf16.mxu0 0
    %1061 = vmatpush1.bf16.xpose.msra.mxu0 0
    %1062 = vmatprep.subr.bf16.mxu0 0
    %1063 = vmatpush1.bf16.xpose.msra.mxu0 0
    %1064 = vmatprep.subr.bf16.mxu0 0
    %1065 = vmatpush1.bf16.xpose.msra.mxu0 %v1048
    %1066 = vmatprep.subr.bf16.mxu0 0
    %1067 = vmatpush2.bf16.xpose.msra.mxu0 0
    %1068 = vmatprep.subr.bf16.mxu0 0
    %1069 = vmatpush2.bf16.xpose.msra.mxu0 0
    %1070 = vmatprep.subr.bf16.mxu0 0
    %1071 = vmatpush2.bf16.xpose.msra.mxu0 0
    %1072 = vmatprep.subr.bf16.mxu0 0
    %1073 = vmatpush2.bf16.xpose.msra.mxu0 0
    %1074 = vmatprep.subr.bf16.mxu0 0
    %1075 = vmatpush2.bf16.xpose.msra.mxu0 0
    %1076 = vmatprep.subr.bf16.mxu0 0
    %1077 = vmatpush2.bf16.xpose.msra.mxu0 0
    %1078 = vmatprep.subr.bf16.mxu0 0
    %1079 = vmatpush2.bf16.xpose.msra.mxu0 0
    %1080 = vmatprep.subr.bf16.mxu0 0
    %1081 = vmatpush2.bf16.xpose.msra.mxu0 0
    %1082 = vmatprep.mubr.bf16.mxu0 0
    %1083 = vmatmul.mubr.bf16.gmra.mxu0 %v1045
    %v1084 = vpop.f32.mrf.mxu0
    %v1085 = vadd.f32 0.0, %v1084
    %v1086 = vpop.f32.mrf.mxu0
    %v1087 = vpop.f32.mrf.mxu0
    %v1088 = vadd.f32 0.0, %v1087
    %v1089 = vpop.f32.mrf.mxu0
    %1090 = vdwg.mxu0
    %v1091 = vsel %vm88, %v1085, -1e+30
    %v1092 = vsel %vm89, %v1088, -1e+30
    %v1093 = vsel %vm350, %v1091, -inf
    %1094 = vmax.xlane.f32.xlu0 %v1093
    %v1095 = vpop.xlane.xlu0 %1094
    %v1096 = vsel %vm350, %v1092, -inf
    %1097 = vmax.xlane.f32.xlu0 %v1096
    %v1098 = vpop.xlane.xlu0 %1097
    %v1099 = vsub.f32 %v1091, %v1095
    %v1100 = vsub.f32 %v1092, %v1098
    %v1101 = vmul.f32 %v1099, 1.442695
    %v1102 = vpow.pop %v1101
    %v1103 = vmul.f32 %v1100, 1.442695
    %v1104 = vpow.pop %v1103
    %v1105 = vsel %vm350, %v1102, 0.0
    %1106 = vadd.xlane.f32.xlu0 %v1105
    %v1107 = vpop.xlane.xlu0 %1106
    %v1108 = vsel %vm350, %v1104, 0.0
    %1109 = vadd.xlane.f32.xlu0 %v1108
    %v1110 = vpop.xlane.xlu0 %1109
    %v1111 = vrcp.pop %v1107
    %v1112 = vrcp.pop %v1110
    %v1113 = vmul.f32 %v1102, %v1111
    %v1114 = vmul.f32 %v1104, %v1112
    %v1115 = vpack.c.bf16 %v1114, %v1113
    %v1116 = vpack.c.bf16 %v1037, %v1034
    %v1118 = vsel %vm350, %v1115, 0
    %1120 = vmatprep.subr.bf16.mxu0 0
    %1121 = vmatpush1.bf16.msra.mxu0 0
    %1122 = vmatprep.subr.bf16.mxu0 0
    %1123 = vmatpush1.bf16.msra.mxu0 0
    %1124 = vmatprep.subr.bf16.mxu0 0
    %1125 = vmatpush1.bf16.msra.mxu0 0
    %1126 = vmatprep.subr.bf16.mxu0 0
    %1127 = vmatpush1.bf16.msra.mxu0 0
    %1128 = vmatprep.subr.bf16.mxu0 0
    %1129 = vmatpush1.bf16.msra.mxu0 0
    %1130 = vmatprep.subr.bf16.mxu0 0
    %1131 = vmatpush1.bf16.msra.mxu0 0
    %1132 = vmatprep.subr.bf16.mxu0 0
    %1133 = vmatpush1.bf16.msra.mxu0 0
    %1134 = vmatprep.subr.bf16.mxu0 0
    %1135 = vmatpush1.bf16.msra.mxu0 %v1116
    %1136 = vmatprep.subr.bf16.mxu0 0
    %1137 = vmatpush2.bf16.msra.mxu0 0
    %1138 = vmatprep.subr.bf16.mxu0 0
    %1139 = vmatpush2.bf16.msra.mxu0 0
    %1140 = vmatprep.subr.bf16.mxu0 0
    %1141 = vmatpush2.bf16.msra.mxu0 0
    %1142 = vmatprep.subr.bf16.mxu0 0
    %1143 = vmatpush2.bf16.msra.mxu0 0
    %1144 = vmatprep.subr.bf16.mxu0 0
    %1145 = vmatpush2.bf16.msra.mxu0 0
    %1146 = vmatprep.subr.bf16.mxu0 0
    %1147 = vmatpush2.bf16.msra.mxu0 0
    %1148 = vmatprep.subr.bf16.mxu0 0
    %1149 = vmatpush2.bf16.msra.mxu0 0
    %1150 = vmatprep.subr.bf16.mxu0 0
    %1151 = vmatpush2.bf16.msra.mxu0 0
    %1152 = vmatprep.mubr.bf16.mxu0 0
    %1153 = vmatmul.mubr.bf16.gmra.mxu0 %v1118
    %v1154 = vpop.f32.mrf.mxu0
    %v1155 = vadd.f32 0.0, %v1154
    %v1156 = vpop.f32.mrf.mxu0
    %v1157 = vpop.f32.mrf.mxu0
    %v1158 = vadd.f32 0.0, %v1157
    %v1159 = vpop.f32.mrf.mxu0
    %1160 = vdwg.mxu0
    %v1161 = vpack.c.bf16 %v1158, %v1155
    %s1162 = scalar_lea.vmem %s4, 8
    %v1163 = vld [vmem:[%s1162] sm:$0xf]
    %v1165 = vsel %vm300, %v1161, 0
    %v1168 = vsel %vm424, %v1163, 0
    %1170 = vmatprep.subr.bf16.mxu0 0
    %1171 = vmatpush1.bf16.msra.mxu0 0
    %1172 = vmatprep.subr.bf16.mxu0 0
    %1173 = vmatpush1.bf16.msra.mxu0 0
    %1174 = vmatprep.subr.bf16.mxu0 0
    %1175 = vmatpush1.bf16.msra.mxu0 0
    %1176 = vmatprep.subr.bf16.mxu0 0
    %1177 = vmatpush1.bf16.msra.mxu0 0
    %1178 = vmatprep.subr.bf16.mxu0 0
    %1179 = vmatpush1.bf16.msra.mxu0 0
    %1180 = vmatprep.subr.bf16.mxu0 0
    %1181 = vmatpush1.bf16.msra.mxu0 0
    %1182 = vmatprep.subr.bf16.mxu0 0
    %1183 = vmatpush1.bf16.msra.mxu0 0
    %1184 = vmatprep.subr.bf16.mxu0 0
    %1185 = vmatpush1.bf16.msra.mxu0 %v1168
    %1186 = vmatprep.subr.bf16.mxu0 0
    %1187 = vmatpush2.bf16.msra.mxu0 0
    %1188 = vmatprep.subr.bf16.mxu0 0
    %1189 = vmatpush2.bf16.msra.mxu0 0
    %1190 = vmatprep.subr.bf16.mxu0 0
    %1191 = vmatpush2.bf16.msra.mxu0 0
    %1192 = vmatprep.subr.bf16.mxu0 0
    %1193 = vmatpush2.bf16.msra.mxu0 0
    %1194 = vmatprep.subr.bf16.mxu0 0
    %1195 = vmatpush2.bf16.msra.mxu0 0
    %1196 = vmatprep.subr.bf16.mxu0 0
    %1197 = vmatpush2.bf16.msra.mxu0 0
    %1198 = vmatprep.subr.bf16.mxu0 0
    %1199 = vmatpush2.bf16.msra.mxu0 0
    %1200 = vmatprep.subr.bf16.mxu0 0
    %1201 = vmatpush2.bf16.msra.mxu0 0
    %1202 = vmatprep.mubr.bf16.mxu0 0
    %1203 = vmatmul.mubr.bf16.gmra.mxu0 %v1165
    %v1204 = vpop.f32.mrf.mxu0
    %v1205 = vadd.f32 0.0, %v1204
    %v1206 = vpop.f32.mrf.mxu0
    %v1207 = vpop.f32.mrf.mxu0
    %v1208 = vadd.f32 0.0, %v1207
    %v1209 = vpop.f32.mrf.mxu0
    %1210 = vdwg.mxu0
    %v1211 = vadd.f32 %v840, %v1205
    %v1212 = vadd.f32 %v841, %v1208
    %s1213 = scalar_lea.vmem %s2, 48
    %v1214 = vld [vmem:[%s1213] sm:$0xf]
    %v1215 = vld [vmem:[%s1213 + $0x4] sm:$0xf]
    %v1216 = vld [vmem:[%s1213 + $0x8] sm:$0xf]
    %v1217 = vld [vmem:[%s1213 + $0xc] sm:$0xf]
    %s1218 = scalar_lea.vmem %s3, 3
    %v1219 = vld [vmem:[%s1218] sm:$0x1]
    %v1221 = vlaneseq
    %v1222 = vshrl.u32 %v1221, 7
    %v1223 = vsub.s32 0, %v1222
    %v1224 = vrot.slane %v1219, %v1223
    %v1230 = vunpack.c.l.b16 %v1214
    %v1231 = vunpack.c.l.b16 %v1215
    %v1232 = vunpack.c.l.b16 %v1216
    %v1233 = vunpack.c.l.b16 %v1217
    %v1234 = vpack.c.b16 %v1231, %v1230
    %v1235 = vpack.c.b16 %v1233, %v1232
    %1238 = vmatprep.subr.bf16.mxu0 0
    %1239 = vmatpush1.bf16.msra.mxu0 0
    %1240 = vmatprep.subr.bf16.mxu0 0
    %1241 = vmatpush1.bf16.msra.mxu0 0
    %1242 = vmatprep.subr.bf16.mxu0 0
    %1243 = vmatpush1.bf16.msra.mxu0 0
    %1244 = vmatprep.subr.bf16.mxu0 0
    %1245 = vmatpush1.bf16.msra.mxu0 0
    %1246 = vmatprep.subr.bf16.mxu0 0
    %1247 = vmatpush1.bf16.msra.mxu0 0
    %1248 = vmatprep.subr.bf16.mxu0 0
    %1249 = vmatpush1.bf16.msra.mxu0 0
    %1250 = vmatprep.subr.bf16.mxu0 0
    %1251 = vmatpush1.bf16.msra.mxu0 %v1235
    %1252 = vmatprep.subr.bf16.mxu0 0
    %1253 = vmatpush1.bf16.msra.mxu0 %v1234
    %1254 = vmatprep.subr.bf16.mxu0 0
    %1255 = vmatpush2.bf16.msra.mxu0 0
    %1256 = vmatprep.subr.bf16.mxu0 0
    %1257 = vmatpush2.bf16.msra.mxu0 0
    %1258 = vmatprep.subr.bf16.mxu0 0
    %1259 = vmatpush2.bf16.msra.mxu0 0
    %1260 = vmatprep.subr.bf16.mxu0 0
    %1261 = vmatpush2.bf16.msra.mxu0 0
    %1262 = vmatprep.subr.bf16.mxu0 0
    %1263 = vmatpush2.bf16.msra.mxu0 0
    %1264 = vmatprep.subr.bf16.mxu0 0
    %1265 = vmatpush2.bf16.msra.mxu0 0
    %1266 = vmatprep.subr.bf16.mxu0 0
    %1267 = vmatpush2.bf16.msra.mxu0 0
    %1268 = vmatprep.subr.bf16.mxu0 0
    %1269 = vmatpush2.bf16.msra.mxu0 0
    %1270 = vmatprep.mubr.bf16.mxu0 0
    %1271 = vmatmul.mubr.bf16.gmra.mxu0 %v121
    %v1272 = vpop.f32.mrf.mxu0
    %v1273 = vadd.f32 %v1224, %v1272
    %v1274 = vpop.f32.mrf.mxu0
    %v1275 = vpop.f32.mrf.mxu0
    %v1276 = vadd.f32 %v1224, %v1275
    %v1277 = vpop.f32.mrf.mxu0
    %1278 = vdwg.mxu0
    %s1279 = scalar_lea.vmem %s2, 112
    %v1280 = vld [vmem:[%s1279] sm:$0xf]
    %v1281 = vld [vmem:[%s1279 + $0x4] sm:$0xf]
    %v1282 = vld [vmem:[%s1279 + $0x8] sm:$0xf]
    %v1283 = vld [vmem:[%s1279 + $0xc] sm:$0xf]
    %s1284 = scalar_lea.vmem %s3, 7
    %v1285 = vld [vmem:[%s1284] sm:$0x1]
    %v1287 = vlaneseq
    %v1288 = vshrl.u32 %v1287, 7
    %v1289 = vsub.s32 0, %v1288
    %v1290 = vrot.slane %v1285, %v1289
    %v1296 = vunpack.c.l.b16 %v1280
    %v1297 = vunpack.c.l.b16 %v1281
    %v1298 = vunpack.c.l.b16 %v1282
    %v1299 = vunpack.c.l.b16 %v1283
    %v1300 = vpack.c.b16 %v1297, %v1296
    %v1301 = vpack.c.b16 %v1299, %v1298
    %1304 = vmatprep.subr.bf16.mxu0 0
    %1305 = vmatpush1.bf16.msra.mxu0 0
    %1306 = vmatprep.subr.bf16.mxu0 0
    %1307 = vmatpush1.bf16.msra.mxu0 0
    %1308 = vmatprep.subr.bf16.mxu0 0
    %1309 = vmatpush1.bf16.msra.mxu0 0
    %1310 = vmatprep.subr.bf16.mxu0 0
    %1311 = vmatpush1.bf16.msra.mxu0 0
    %1312 = vmatprep.subr.bf16.mxu0 0
    %1313 = vmatpush1.bf16.msra.mxu0 0
    %1314 = vmatprep.subr.bf16.mxu0 0
    %1315 = vmatpush1.bf16.msra.mxu0 0
    %1316 = vmatprep.subr.bf16.mxu0 0
    %1317 = vmatpush1.bf16.msra.mxu0 %v1301
    %1318 = vmatprep.subr.bf16.mxu0 0
    %1319 = vmatpush1.bf16.msra.mxu0 %v1300
    %1320 = vmatprep.subr.bf16.mxu0 0
    %1321 = vmatpush2.bf16.msra.mxu0 0
    %1322 = vmatprep.subr.bf16.mxu0 0
    %1323 = vmatpush2.bf16.msra.mxu0 0
    %1324 = vmatprep.subr.bf16.mxu0 0
    %1325 = vmatpush2.bf16.msra.mxu0 0
    %1326 = vmatprep.subr.bf16.mxu0 0
    %1327 = vmatpush2.bf16.msra.mxu0 0
    %1328 = vmatprep.subr.bf16.mxu0 0
    %1329 = vmatpush2.bf16.msra.mxu0 0
    %1330 = vmatprep.subr.bf16.mxu0 0
    %1331 = vmatpush2.bf16.msra.mxu0 0
    %1332 = vmatprep.subr.bf16.mxu0 0
    %1333 = vmatpush2.bf16.msra.mxu0 0
    %1334 = vmatprep.subr.bf16.mxu0 0
    %1335 = vmatpush2.bf16.msra.mxu0 0
    %1336 = vmatprep.mubr.bf16.mxu0 0
    %1337 = vmatmul.mubr.bf16.gmra.mxu0 %v121
    %v1338 = vpop.f32.mrf.mxu0
    %v1339 = vadd.f32 %v1290, %v1338
    %v1340 = vpop.f32.mrf.mxu0
    %v1341 = vpop.f32.mrf.mxu0
    %v1342 = vadd.f32 %v1290, %v1341
    %v1343 = vpop.f32.mrf.mxu0
    %1344 = vdwg.mxu0
    %s1345 = scalar_lea.vmem %s2, 176
    %v1346 = vld [vmem:[%s1345] sm:$0xf]
    %v1347 = vld [vmem:[%s1345 + $0x4] sm:$0xf]
    %v1348 = vld [vmem:[%s1345 + $0x8] sm:$0xf]
    %v1349 = vld [vmem:[%s1345 + $0xc] sm:$0xf]
    %s1350 = scalar_lea.vmem %s3, 11
    %v1351 = vld [vmem:[%s1350] sm:$0x1]
    %v1353 = vlaneseq
    %v1354 = vshrl.u32 %v1353, 7
    %v1355 = vsub.s32 0, %v1354
    %v1356 = vrot.slane %v1351, %v1355
    %v1362 = vunpack.c.l.b16 %v1346
    %v1363 = vunpack.c.l.b16 %v1347
    %v1364 = vunpack.c.l.b16 %v1348
    %v1365 = vunpack.c.l.b16 %v1349
    %v1366 = vpack.c.b16 %v1363, %v1362
    %v1367 = vpack.c.b16 %v1365, %v1364
    %1370 = vmatprep.subr.bf16.mxu0 0
    %1371 = vmatpush1.bf16.msra.mxu0 0
    %1372 = vmatprep.subr.bf16.mxu0 0
    %1373 = vmatpush1.bf16.msra.mxu0 0
    %1374 = vmatprep.subr.bf16.mxu0 0
    %1375 = vmatpush1.bf16.msra.mxu0 0
    %1376 = vmatprep.subr.bf16.mxu0 0
    %1377 = vmatpush1.bf16.msra.mxu0 0
    %1378 = vmatprep.subr.bf16.mxu0 0
    %1379 = vmatpush1.bf16.msra.mxu0 0
    %1380 = vmatprep.subr.bf16.mxu0 0
    %1381 = vmatpush1.bf16.msra.mxu0 0
    %1382 = vmatprep.subr.bf16.mxu0 0
    %1383 = vmatpush1.bf16.msra.mxu0 %v1367
    %1384 = vmatprep.subr.bf16.mxu0 0
    %1385 = vmatpush1.bf16.msra.mxu0 %v1366
    %1386 = vmatprep.subr.bf16.mxu0 0
    %1387 = vmatpush2.bf16.msra.mxu0 0
    %1388 = vmatprep.subr.bf16.mxu0 0
    %1389 = vmatpush2.bf16.msra.mxu0 0
    %1390 = vmatprep.subr.bf16.mxu0 0
    %1391 = vmatpush2.bf16.msra.mxu0 0
    %1392 = vmatprep.subr.bf16.mxu0 0
    %1393 = vmatpush2.bf16.msra.mxu0 0
    %1394 = vmatprep.subr.bf16.mxu0 0
    %1395 = vmatpush2.bf16.msra.mxu0 0
    %1396 = vmatprep.subr.bf16.mxu0 0
    %1397 = vmatpush2.bf16.msra.mxu0 0
    %1398 = vmatprep.subr.bf16.mxu0 0
    %1399 = vmatpush2.bf16.msra.mxu0 0
    %1400 = vmatprep.subr.bf16.mxu0 0
    %1401 = vmatpush2.bf16.msra.mxu0 0
    %1402 = vmatprep.mubr.bf16.mxu0 0
    %1403 = vmatmul.mubr.bf16.gmra.mxu0 %v121
    %v1404 = vpop.f32.mrf.mxu0
    %v1405 = vadd.f32 %v1356, %v1404
    %v1406 = vpop.f32.mrf.mxu0
    %v1407 = vpop.f32.mrf.mxu0
    %v1408 = vadd.f32 %v1356, %v1407
    %v1409 = vpop.f32.mrf.mxu0
    %1410 = vdwg.mxu0
    %v1411 = vmul.f32 %v1273, 0.35355338
    %v1412 = vmul.f32 %v1276, 0.35355338
    %v1413 = vpack.c.bf16 %v1412, %v1411
    %v1414 = vpack.c.bf16 %v1342, %v1339
    %v1416 = vsel %vm300, %v1413, 0
    %v1419 = vsel %vm300, %v1414, 0
    %1421 = vmatprep.subr.bf16.mxu0 0
    %1422 = vmatpush1.bf16.xpose.msra.mxu0 0
    %1423 = vmatprep.subr.bf16.mxu0 0
    %1424 = vmatpush1.bf16.xpose.msra.mxu0 0
    %1425 = vmatprep.subr.bf16.mxu0 0
    %1426 = vmatpush1.bf16.xpose.msra.mxu0 0
    %1427 = vmatprep.subr.bf16.mxu0 0
    %1428 = vmatpush1.bf16.xpose.msra.mxu0 0
    %1429 = vmatprep.subr.bf16.mxu0 0
    %1430 = vmatpush1.bf16.xpose.msra.mxu0 0
    %1431 = vmatprep.subr.bf16.mxu0 0
    %1432 = vmatpush1.bf16.xpose.msra.mxu0 0
    %1433 = vmatprep.subr.bf16.mxu0 0
    %1434 = vmatpush1.bf16.xpose.msra.mxu0 0
    %1435 = vmatprep.subr.bf16.mxu0 0
    %1436 = vmatpush1.bf16.xpose.msra.mxu0 %v1419
    %1437 = vmatprep.subr.bf16.mxu0 0
    %1438 = vmatpush2.bf16.xpose.msra.mxu0 0
    %1439 = vmatprep.subr.bf16.mxu0 0
    %1440 = vmatpush2.bf16.xpose.msra.mxu0 0
    %1441 = vmatprep.subr.bf16.mxu0 0
    %1442 = vmatpush2.bf16.xpose.msra.mxu0 0
    %1443 = vmatprep.subr.bf16.mxu0 0
    %1444 = vmatpush2.bf16.xpose.msra.mxu0 0
    %1445 = vmatprep.subr.bf16.mxu0 0
    %1446 = vmatpush2.bf16.xpose.msra.mxu0 0
    %1447 = vmatprep.subr.bf16.mxu0 0
    %1448 = vmatpush2.bf16.xpose.msra.mxu0 0
    %1449 = vmatprep.subr.bf16.mxu0 0
    %1450 = vmatpush2.bf16.xpose.msra.mxu0 0
    %1451 = vmatprep.subr.bf16.mxu0 0
    %1452 = vmatpush2.bf16.xpose.msra.mxu0 0
    %1453 = vmatprep.mubr.bf16.mxu0 0
    %1454 = vmatmul.mubr.bf16.gmra.mxu0 %v1416
    %v1455 = vpop.f32.mrf.mxu0
    %v1456 = vadd.f32 0.0, %v1455
    %v1457 = vpop.f32.mrf.mxu0
    %v1458 = vpop.f32.mrf.mxu0
    %v1459 = vadd.f32 0.0, %v1458
    %v1460 = vpop.f32.mrf.mxu0
    %1461 = vdwg.mxu0
    %v1462 = vsel %vm88, %v1456, -1e+30
    %v1463 = vsel %vm89, %v1459, -1e+30
    %v1464 = vsel %vm350, %v1462, -inf
    %1465 = vmax.xlane.f32.xlu0 %v1464
    %v1466 = vpop.xlane.xlu0 %1465
    %v1467 = vsel %vm350, %v1463, -inf
    %1468 = vmax.xlane.f32.xlu0 %v1467
    %v1469 = vpop.xlane.xlu0 %1468
    %v1470 = vsub.f32 %v1462, %v1466
    %v1471 = vsub.f32 %v1463, %v1469
    %v1472 = vmul.f32 %v1470, 1.442695
    %v1473 = vpow.pop %v1472
    %v1474 = vmul.f32 %v1471, 1.442695
    %v1475 = vpow.pop %v1474
    %v1476 = vsel %vm350, %v1473, 0.0
    %1477 = vadd.xlane.f32.xlu0 %v1476
    %v1478 = vpop.xlane.xlu0 %1477
    %v1479 = vsel %vm350, %v1475, 0.0
    %1480 = vadd.xlane.f32.xlu0 %v1479
    %v1481 = vpop.xlane.xlu0 %1480
    %v1482 = vrcp.pop %v1478
    %v1483 = vrcp.pop %v1481
    %v1484 = vmul.f32 %v1473, %v1482
    %v1485 = vmul.f32 %v1475, %v1483
    %v1486 = vpack.c.bf16 %v1485, %v1484
    %v1487 = vpack.c.bf16 %v1408, %v1405
    %v1489 = vsel %vm350, %v1486, 0
    %1491 = vmatprep.subr.bf16.mxu0 0
    %1492 = vmatpush1.bf16.msra.mxu0 0
    %1493 = vmatprep.subr.bf16.mxu0 0
    %1494 = vmatpush1.bf16.msra.mxu0 0
    %1495 = vmatprep.subr.bf16.mxu0 0
    %1496 = vmatpush1.bf16.msra.mxu0 0
    %1497 = vmatprep.subr.bf16.mxu0 0
    %1498 = vmatpush1.bf16.msra.mxu0 0
    %1499 = vmatprep.subr.bf16.mxu0 0
    %1500 = vmatpush1.bf16.msra.mxu0 0
    %1501 = vmatprep.subr.bf16.mxu0 0
    %1502 = vmatpush1.bf16.msra.mxu0 0
    %1503 = vmatprep.subr.bf16.mxu0 0
    %1504 = vmatpush1.bf16.msra.mxu0 0
    %1505 = vmatprep.subr.bf16.mxu0 0
    %1506 = vmatpush1.bf16.msra.mxu0 %v1487
    %1507 = vmatprep.subr.bf16.mxu0 0
    %1508 = vmatpush2.bf16.msra.mxu0 0
    %1509 = vmatprep.subr.bf16.mxu0 0
    %1510 = vmatpush2.bf16.msra.mxu0 0
    %1511 = vmatprep.subr.bf16.mxu0 0
    %1512 = vmatpush2.bf16.msra.mxu0 0
    %1513 = vmatprep.subr.bf16.mxu0 0
    %1514 = vmatpush2.bf16.msra.mxu0 0
    %1515 = vmatprep.subr.bf16.mxu0 0
    %1516 = vmatpush2.bf16.msra.mxu0 0
    %1517 = vmatprep.subr.bf16.mxu0 0
    %1518 = vmatpush2.bf16.msra.mxu0 0
    %1519 = vmatprep.subr.bf16.mxu0 0
    %1520 = vmatpush2.bf16.msra.mxu0 0
    %1521 = vmatprep.subr.bf16.mxu0 0
    %1522 = vmatpush2.bf16.msra.mxu0 0
    %1523 = vmatprep.mubr.bf16.mxu0 0
    %1524 = vmatmul.mubr.bf16.gmra.mxu0 %v1489
    %v1525 = vpop.f32.mrf.mxu0
    %v1526 = vadd.f32 0.0, %v1525
    %v1527 = vpop.f32.mrf.mxu0
    %v1528 = vpop.f32.mrf.mxu0
    %v1529 = vadd.f32 0.0, %v1528
    %v1530 = vpop.f32.mrf.mxu0
    %1531 = vdwg.mxu0
    %v1532 = vpack.c.bf16 %v1529, %v1526
    %s1533 = scalar_lea.vmem %s4, 12
    %v1534 = vld [vmem:[%s1533] sm:$0xf]
    %v1536 = vsel %vm300, %v1532, 0
    %v1539 = vsel %vm424, %v1534, 0
    %1541 = vmatprep.subr.bf16.mxu0 0
    %1542 = vmatpush1.bf16.msra.mxu0 0
    %1543 = vmatprep.subr.bf16.mxu0 0
    %1544 = vmatpush1.bf16.msra.mxu0 0
    %1545 = vmatprep.subr.bf16.mxu0 0
    %1546 = vmatpush1.bf16.msra.mxu0 0
    %1547 = vmatprep.subr.bf16.mxu0 0
    %1548 = vmatpush1.bf16.msra.mxu0 0
    %1549 = vmatprep.subr.bf16.mxu0 0
    %1550 = vmatpush1.bf16.msra.mxu0 0
    %1551 = vmatprep.subr.bf16.mxu0 0
    %1552 = vmatpush1.bf16.msra.mxu0 0
    %1553 = vmatprep.subr.bf16.mxu0 0
    %1554 = vmatpush1.bf16.msra.mxu0 0
    %1555 = vmatprep.subr.bf16.mxu0 0
    %1556 = vmatpush1.bf16.msra.mxu0 %v1539
    %1557 = vmatprep.subr.bf16.mxu0 0
    %1558 = vmatpush2.bf16.msra.mxu0 0
    %1559 = vmatprep.subr.bf16.mxu0 0
    %1560 = vmatpush2.bf16.msra.mxu0 0
    %1561 = vmatprep.subr.bf16.mxu0 0
    %1562 = vmatpush2.bf16.msra.mxu0 0
    %1563 = vmatprep.subr.bf16.mxu0 0
    %1564 = vmatpush2.bf16.msra.mxu0 0
    %1565 = vmatprep.subr.bf16.mxu0 0
    %1566 = vmatpush2.bf16.msra.mxu0 0
    %1567 = vmatprep.subr.bf16.mxu0 0
    %1568 = vmatpush2.bf16.msra.mxu0 0
    %1569 = vmatprep.subr.bf16.mxu0 0
    %1570 = vmatpush2.bf16.msra.mxu0 0
    %1571 = vmatprep.subr.bf16.mxu0 0
    %1572 = vmatpush2.bf16.msra.mxu0 0
    %1573 = vmatprep.mubr.bf16.mxu0 0
    %1574 = vmatmul.mubr.bf16.gmra.mxu0 %v1536
    %v1575 = vpop.f32.mrf.mxu0
    %v1576 = vadd.f32 0.0, %v1575
    %v1577 = vpop.f32.mrf.mxu0
    %v1578 = vpop.f32.mrf.mxu0
    %v1579 = vadd.f32 0.0, %v1578
    %v1580 = vpop.f32.mrf.mxu0
    %1581 = vdwg.mxu0
    %v1582 = vadd.f32 %v1211, %v1576
    %v1583 = vadd.f32 %v1212, %v1579
    %v1584 = vld [vmem:[%s1 + $0x2] sm:$0x1]
    %v1585 = vld [vmem:[%s1 + $0x3] sm:$0x1]
    %v1586 = vsel %vm35, %v1582, 0.0
    %1587 = vadd.xlane.f32.xlu0 %v1586
    %v1588 = vpop.xlane.xlu0 %1587
    %v1589 = vsel %vm35, %v1583, 0.0
    %1590 = vadd.xlane.f32.xlu0 %v1589
    %v1591 = vpop.xlane.xlu0 %1590
    %v1592 = vmul.f32 %v1588, %v42
    %v1593 = vmul.f32 %v1591, %v42
    %v1594 = vsub.f32 %v1582, %v1592
    %v1595 = vsub.f32 %v1583, %v1593
    %v1596 = vmul.f32 %v1594, %v1594
    %v1597 = vmul.f32 %v1595, %v1595
    %v1598 = vsel %vm35, %v1596, 0.0
    %1599 = vadd.xlane.f32.xlu0 %v1598
    %v1600 = vpop.xlane.xlu0 %1599
    %v1601 = vsel %vm35, %v1597, 0.0
    %1602 = vadd.xlane.f32.xlu0 %v1601
    %v1603 = vpop.xlane.xlu0 %1602
    %v1604 = vmul.f32 %v1600, %v42
    %v1605 = vmul.f32 %v1603, %v42
    %v1606 = vadd.f32 %v1604, 1e-05
    %v1607 = vadd.f32 %v1605, 1e-05
    %v1608 = vrsqrt.pop %v1606
    %v1609 = vrsqrt.pop %v1607
    %v1610 = vmul.f32 %v1594, %v1608
    %v1611 = vmul.f32 %v1595, %v1609
    %v1612 = vlaneseq
    %v1613 = vshrl.u32 %v1612, 7
    %v1614 = vsub.s32 0, %v1613
    %v1615 = vrot.slane %v1584, %v1614
    %v1616 = vmul.f32 %v1610, %v1615
    %v1617 = vmul.f32 %v1611, %v1615
    %v1618 = vlaneseq
    %v1619 = vshrl.u32 %v1618, 7
    %v1620 = vsub.s32 0, %v1619
    %v1621 = vrot.slane %v1585, %v1620
    %v1622 = vadd.f32 %v1616, %v1621
    %v1623 = vadd.f32 %v1617, %v1621
    %v1624 = vpack.c.bf16 %v1623, %v1622
    %v1625 = vld [vmem:[%s5] sm:$0xf]
    %v1626 = vld [vmem:[%s5 + $0x4] sm:$0xf]
    %v1627 = vld [vmem:[%s5 + $0x8] sm:$0xf]
    %v1628 = vld [vmem:[%s5 + $0xc] sm:$0xf]
    %v1629 = vld [vmem:[%s6] sm:$0x1]
    %v1631 = vlaneseq
    %v1632 = vshrl.u32 %v1631, 7
    %v1633 = vsub.s32 0, %v1632
    %v1634 = vrot.slane %v1629, %v1633
    %v1640 = vunpack.c.l.b16 %v1625
    %v1641 = vunpack.c.l.b16 %v1626
    %v1642 = vunpack.c.l.b16 %v1627
    %v1643 = vunpack.c.l.b16 %v1628
    %v1644 = vpack.c.b16 %v1641, %v1640
    %v1645 = vpack.c.b16 %v1643, %v1642
    %v1649 = vsel %vm35, %v1624, 0
    %1651 = vmatprep.subr.bf16.mxu0 0
    %1652 = vmatpush1.bf16.msra.mxu0 0
    %1653 = vmatprep.subr.bf16.mxu0 0
    %1654 = vmatpush1.bf16.msra.mxu0 0
    %1655 = vmatprep.subr.bf16.mxu0 0
    %1656 = vmatpush1.bf16.msra.mxu0 0
    %1657 = vmatprep.subr.bf16.mxu0 0
    %1658 = vmatpush1.bf16.msra.mxu0 0
    %1659 = vmatprep.subr.bf16.mxu0 0
    %1660 = vmatpush1.bf16.msra.mxu0 0
    %1661 = vmatprep.subr.bf16.mxu0 0
    %1662 = vmatpush1.bf16.msra.mxu0 0
    %1663 = vmatprep.subr.bf16.mxu0 0
    %1664 = vmatpush1.bf16.msra.mxu0 %v1645
    %1665 = vmatprep.subr.bf16.mxu0 0
    %1666 = vmatpush1.bf16.msra.mxu0 %v1644
    %1667 = vmatprep.subr.bf16.mxu0 0
    %1668 = vmatpush2.bf16.msra.mxu0 0
    %1669 = vmatprep.subr.bf16.mxu0 0
    %1670 = vmatpush2.bf16.msra.mxu0 0
    %1671 = vmatprep.subr.bf16.mxu0 0
    %1672 = vmatpush2.bf16.msra.mxu0 0
    %1673 = vmatprep.subr.bf16.mxu0 0
    %1674 = vmatpush2.bf16.msra.mxu0 0
    %1675 = vmatprep.subr.bf16.mxu0 0
    %1676 = vmatpush2.bf16.msra.mxu0 0
    %1677 = vmatprep.subr.bf16.mxu0 0
    %1678 = vmatpush2.bf16.msra.mxu0 0
    %1679 = vmatprep.subr.bf16.mxu0 0
    %1680 = vmatpush2.bf16.msra.mxu0 0
    %1681 = vmatprep.subr.bf16.mxu0 0
    %1682 = vmatpush2.bf16.msra.mxu0 0
    %1683 = vmatprep.mubr.bf16.mxu0 0
    %1684 = vmatmul.mubr.bf16.gmra.mxu0 %v1649
    %v1685 = vpop.f32.mrf.mxu0
    %v1686 = vadd.f32 %v1634, %v1685
    %v1687 = vpop.f32.mrf.mxu0
    %v1688 = vpop.f32.mrf.mxu0
    %v1689 = vadd.f32 %v1634, %v1688
    %v1690 = vpop.f32.mrf.mxu0
    %1691 = vdwg.mxu0
    %v1692 = vmul.f32 %v1686, 0.5
    %v1693 = vmul.f32 %v1689, 0.5
    %v1694 = vmul.f32 %v1686, 0.044715
    %v1695 = vmul.f32 %v1689, 0.044715
    %v1696 = vmul.f32 %v1694, %v1686
    %v1697 = vmul.f32 %v1695, %v1689
    %v1698 = vmul.f32 %v1696, %v1686
    %v1699 = vmul.f32 %v1697, %v1689
    %v1700 = vadd.f32 %v1686, %v1698
    %v1701 = vadd.f32 %v1689, %v1699
    %v1702 = vmul.f32 %v1700, 0.7978846
    %v1703 = vmul.f32 %v1701, 0.7978846
    %v1704 = vtanh.pop %v1702
    %v1705 = vtanh.pop %v1703
    %v1706 = vadd.f32 %v1704, 1.0
    %v1707 = vadd.f32 %v1705, 1.0
    %v1708 = vmul.f32 %v1692, %v1706
    %v1709 = vmul.f32 %v1693, %v1707
    %v1710 = vpack.c.bf16 %v1709, %v1708
    %v1711 = vld [vmem:[%s7] sm:$0xf]
    %v1712 = vld [vmem:[%s7 + $0x4] sm:$0xf]
    %v1713 = vld [vmem:[%s7 + $0x8] sm:$0xf]
    %v1714 = vld [vmem:[%s7 + $0xc] sm:$0xf]
    %v1715 = vld [vmem:[%s7 + $0x10] sm:$0xf]
    %v1716 = vld [vmem:[%s7 + $0x14] sm:$0xf]
    %v1717 = vld [vmem:[%s7 + $0x18] sm:$0xf]
    %v1718 = vld [vmem:[%s7 + $0x1c] sm:$0xf]
    %v1719 = vld [vmem:[%s7 + $0x20] sm:$0xf]
    %v1720 = vld [vmem:[%s7 + $0x24] sm:$0xf]
    %v1721 = vld [vmem:[%s7 + $0x28] sm:$0xf]
    %v1722 = vld [vmem:[%s7 + $0x2c] sm:$0xf]
    %v1723 = vld [vmem:[%s7 + $0x30] sm:$0xf]
    %v1724 = vld [vmem:[%s7 + $0x34] sm:$0xf]
    %v1725 = vld [vmem:[%s7 + $0x38] sm:$0xf]
    %v1726 = vld [vmem:[%s7 + $0x3c] sm:$0xf]
    %v1727 = vld [vmem:[%s1 + $0x5] sm:$0x1]
    %v1728 = vlaneseq
    %v1729 = vshrl.u32 %v1728, 7
    %v1730 = vsub.s32 0, %v1729
    %v1731 = vrot.slane %v1727, %v1730
    %v1748 = vunpack.c.l.b16 %v1711
    %v1749 = vunpack.c.l.b16 %v1712
    %v1750 = vunpack.c.l.b16 %v1713
    %v1751 = vunpack.c.l.b16 %v1714
    %v1752 = vunpack.c.l.b16 %v1715
    %v1753 = vunpack.c.l.b16 %v1716
    %v1754 = vunpack.c.l.b16 %v1717
    %v1755 = vunpack.c.l.b16 %v1718
    %v1756 = vunpack.c.l.b16 %v1719
    %v1757 = vunpack.c.l.b16 %v1720
    %v1758 = vunpack.c.l.b16 %v1721
    %v1759 = vunpack.c.l.b16 %v1722
    %v1760 = vunpack.c.l.b16 %v1723
    %v1761 = vunpack.c.l.b16 %v1724
    %v1762 = vunpack.c.l.b16 %v1725
    %v1763 = vunpack.c.l.b16 %v1726
    %v1764 = vpack.c.b16 %v1749, %v1748
    %v1765 = vpack.c.b16 %v1751, %v1750
    %v1766 = vpack.c.b16 %v1753, %v1752
    %v1767 = vpack.c.b16 %v1755, %v1754
    %v1768 = vpack.c.b16 %v1757, %v1756
    %v1769 = vpack.c.b16 %v1759, %v1758
    %v1770 = vpack.c.b16 %v1761, %v1760
    %v1771 = vpack.c.b16 %v1763, %v1762
    %1780 = vmatprep.subr.bf16.mxu0 0
    %1781 = vmatpush1.bf16.msra.mxu0 %v1771
    %1782 = vmatprep.subr.bf16.mxu0 0
    %1783 = vmatpush1.bf16.msra.mxu0 %v1770
    %1784 = vmatprep.subr.bf16.mxu0 0
    %1785 = vmatpush1.bf16.msra.mxu0 %v1769
    %1786 = vmatprep.subr.bf16.mxu0 0
    %1787 = vmatpush1.bf16.msra.mxu0 %v1768
    %1788 = vmatprep.subr.bf16.mxu0 0
    %1789 = vmatpush1.bf16.msra.mxu0 %v1767
    %1790 = vmatprep.subr.bf16.mxu0 0
    %1791 = vmatpush1.bf16.msra.mxu0 %v1766
    %1792 = vmatprep.subr.bf16.mxu0 0
    %1793 = vmatpush1.bf16.msra.mxu0 %v1765
    %1794 = vmatprep.subr.bf16.mxu0 0
    %1795 = vmatpush1.bf16.msra.mxu0 %v1764
    %1796 = vmatprep.subr.bf16.mxu0 0
    %1797 = vmatpush2.bf16.msra.mxu0 0
    %1798 = vmatprep.subr.bf16.mxu0 0
    %1799 = vmatpush2.bf16.msra.mxu0 0
    %1800 = vmatprep.subr.bf16.mxu0 0
    %1801 = vmatpush2.bf16.msra.mxu0 0
    %1802 = vmatprep.subr.bf16.mxu0 0
    %1803 = vmatpush2.bf16.msra.mxu0 0
    %1804 = vmatprep.subr.bf16.mxu0 0
    %1805 = vmatpush2.bf16.msra.mxu0 0
    %1806 = vmatprep.subr.bf16.mxu0 0
    %1807 = vmatpush2.bf16.msra.mxu0 0
    %1808 = vmatprep.subr.bf16.mxu0 0
    %1809 = vmatpush2.bf16.msra.mxu0 0
    %1810 = vmatprep.subr.bf16.mxu0 0
    %1811 = vmatpush2.bf16.msra.mxu0 0
    %1812 = vmatprep.mubr.bf16.mxu0 0
    %1813 = vmatmul.mubr.bf16.gmra.mxu0 %v1710
    %v1814 = vpop.f32.mrf.mxu0
    %v1815 = vadd.f32 %v1731, %v1814
    %v1816 = vpop.f32.mrf.mxu0
    %v1817 = vpop.f32.mrf.mxu0
    %v1818 = vadd.f32 %v1731, %v1817
    %v1819 = vpop.f32.mrf.mxu0
    %1820 = vdwg.mxu0
    %v1821 = vadd.f32 %v1582, %v1815
    %v1822 = vadd.f32 %v1583, %v1818
    %1823 = vst.msk [vmem:[#allocation2] sm:$0xff] %vm35, %v1821
    %1824 = vst.msk [vmem:[#allocation2 + $0x8] sm:$0xff] %vm35, %v1822
    // Predicated region
    $region34: #{tpu_custom_call.1} parent=1 // pred_check
      _
    $region35: #{tpu_custom_call.1} parent=1 // pred_check_branch
      %1826 = sbr.rel (0) target = $region37
    $region36: #{tpu_custom_call.1} parent=1 // pred_region
      %s1828 = ssub.s32 256, 256
      %1829 = vsyncadd [#allocation3], %s1828
      %s1830 = sshll.u32 [#allocation2], 4
      %s1831 = int_to_ptr.vmem [resolvable:$true] %s1830
      %1836 = dma.vmem_to_hbm [thread:$0]  %s1831, 256, %s8, [#allocation3], 128, 128, 8
    $region37: #{tpu_custom_call.1} parent=1 // pred_fallthru
      _
    // Predicated region
    $region38: #{tpu_custom_call.1} parent=1 // pred_check
      _
    $region39: #{tpu_custom_call.1} parent=1 // pred_check_branch
      %1838 = sbr.rel (0) target = $region41
    $region40: #{tpu_custom_call.1} parent=1 // pred_region
      %1839 = dma.done [#allocation3], 256
    $region41: #{tpu_custom_call.1} parent=1 // pred_fallthru
      _
    %1840 = vsyncpa [#allocation3], 1

</llo_original>
